<compile_context>
chip_gen: v6e
topology: v6e:2x2x1
jax: 0.10.0
libtpu: 0.0.40
codegen_flags: <defaults>
</compile_context>

<pallas_src>
import numpy as np
import jax
import jax.numpy as jnp
from jax.experimental import pallas as pl
from jax.experimental.pallas import tpu as pltpu

SIZES = (1, 2, 3, 6)
BN_EPS = 1e-5
NEG_BIG = -1e30          # additive "masked off" value: relu(finite + NEG_BIG) == 0


# ----------------------------- host-side factor matrices ----------------------------- #
def adaptive_pool_matrix(out_size: int, in_size: int) -> np.ndarray:
    """Row i averages x[start:end] exactly like nn.AdaptiveAvgPool (1-D factor)."""
    m = np.zeros((out_size, in_size), dtype=np.float64)
    for i in range(out_size):
        start = (i * in_size) // out_size
        end = -(-((i + 1) * in_size) // out_size)  # ceil
        m[i, start:end] = 1.0 / (end - start)
    return m


def bilinear_up_matrix(out_size: int, in_size: int) -> np.ndarray:
    """F.interpolate(mode='bilinear', align_corners=True) as a 1-D factor matrix."""
    m = np.zeros((out_size, in_size), dtype=np.float64)
    if in_size == 1:
        m[:, 0] = 1.0
        return m
    for o in range(out_size):
        src = o * (in_size - 1) / (out_size - 1) if out_size > 1 else 0.0
        lo = int(np.floor(src))
        hi = min(lo + 1, in_size - 1)
        w = src - lo
        m[o, lo] += 1.0 - w
        m[o, hi] += w
    return m


# ---------------------------------- Pallas kernels ---------------------------------- #
def _pool_conv_kernel(x_ref, mp_ref, w_ref, sm_ref, z_ref, acc_ref):
    """Phase 1: accumulate pooled = mp @ x over HW tiles, then fused 1x1 conv + ReLU."""
    t = pl.program_id(1)

    @pl.when(t == 0)
    def _():
        acc_ref[...] = jnp.zeros_like(acc_ref)

    # (R, T) bf16 @ (T, C) bf16 -> f32 accumulate: all 4 adaptive-avg-pools in one matmul.
    acc_ref[...] += jnp.dot(mp_ref[...], x_ref[0], preferred_element_type=jnp.float32)

    @pl.when(t == pl.num_programs(1) - 1)
    def _():
        # Fused 1x1 convs of all branches (BN scale folded into w).  sm_ref carries the
        # BN-folded bias on block-diagonal (row-block, col-block) entries and -1e30
        # elsewhere, so the ReLU also zeroes cross-branch terms (no mask multiply).
        z = jnp.dot(acc_ref[...].astype(jnp.bfloat16), w_ref[...],
                    preferred_element_type=jnp.float32)
        z_ref[0] = jnp.maximum(z + sm_ref[...], 0.0).astype(z_ref.dtype)


def _upsample_concat_kernel(z_ref, mu_ref, x_ref, out_ref):
    """Phase 2: bilinear upsample of all 4 branches for one HW tile + identity concat."""
    up = jnp.dot(mu_ref[...], z_ref[0], preferred_element_type=jnp.float32)  # (T, 4*Co)
    nbco = up.shape[-1]
    # Single fused output slab: [branch(1) | branch(2) | branch(3) | branch(6) | x].
    # At production channel counts both slices are 128-lane aligned -> unmasked vst.
    out_ref[0, :, :nbco] = up.astype(out_ref.dtype)
    out_ref[0, :, nbco:] = x_ref[0]


# ------------------------------------ wrappers ------------------------------------ #
def _pick_hw_tile(hw, c, c_out, r, vmem_budget_bytes=24 << 20, max_tile=4096):
    """Largest multiple-of-128 divisor of hw whose phase-2 working set fits the budget.

    Counts the double-buffered bf16 x / out / mu tiles (phase 2 is the widest phase).
    Falls back to the full hw when hw has no multiple-of-128 divisor; production shapes
    where hw is not a multiple of 128 should pad hw host-side.  Re-derive the budget per
    chip (v7x: 64 MiB physical, 32 MiB default scoped limit) and keep tiles >= 512 rows.
    """
    bytes_per_row = 2 * 2 * (c + c_out + r)                 # bf16, double buffered
    cap = int(min(max(vmem_budget_bytes // max(bytes_per_row, 1), 128), max_tile, hw))
    best = None
    for cand in range(128, cap + 1, 128):
        if hw % cand == 0:
            best = cand
    return best if best is not None else hw


def _call_pool_conv(x_flat, mp, w, shift_mask, tile_hw, single_buffer_consts):
    n, hw, c = x_flat.shape
    r = mp.shape[0]
    nbco = w.shape[1]
    n_t = hw // tile_hw

    if single_buffer_consts:
        # Grid-constant params: no point double-buffering them (VMEM headroom, esp. v7x).
        def const_spec(shape, imap):
            return pl.BlockSpec(shape, imap, pipeline_mode=pl.Buffered(1))
    else:
        const_spec = pl.BlockSpec

    return pl.pallas_call(
        _pool_conv_kernel,
        out_shape=jax.ShapeDtypeStruct((n, r, nbco), jnp.bfloat16),
        grid_spec=pltpu.PrefetchScalarGridSpec(
            num_scalar_prefetch=0,
            grid=(n, n_t),                                   # reduction (HW) axis last
            in_specs=[
                pl.BlockSpec((1, tile_hw, c), lambda b, t: (b, t, 0)),
                pl.BlockSpec((r, tile_hw), lambda b, t: (0, t)),
                const_spec((c, nbco), lambda b, t: (0, 0)),
                const_spec((r, nbco), lambda b, t: (0, 0)),
            ],
            out_specs=pl.BlockSpec((1, r, nbco), lambda b, t: (b, 0, 0)),
            scratch_shapes=[pltpu.VMEM((r, c), jnp.float32)],
        ),
        compiler_params=pltpu.CompilerParams(
            dimension_semantics=("parallel", "arbitrary")),
    )(x_flat, mp, w, shift_mask)


def _call_upsample_concat(z, mu, x_flat, tile_hw):
    n, hw, c = x_flat.shape
    r, nbco = z.shape[1], z.shape[2]
    c_out = nbco + c
    n_t = hw // tile_hw

    return pl.pallas_call(
        _upsample_concat_kernel,
        out_shape=jax.ShapeDtypeStruct((n, hw, c_out), jnp.bfloat16),
        grid_spec=pltpu.PrefetchScalarGridSpec(
            num_scalar_prefetch=0,
            grid=(n, n_t),
            in_specs=[
                pl.BlockSpec((1, r, nbco), lambda b, t: (b, 0, 0)),
                pl.BlockSpec((tile_hw, r), lambda b, t: (t, 0)),
                pl.BlockSpec((1, tile_hw, c), lambda b, t: (b, t, 0)),
            ],
            out_specs=pl.BlockSpec((1, tile_hw, c_out), lambda b, t: (b, t, 0)),
        ),
        compiler_params=pltpu.CompilerParams(
            dimension_semantics=("parallel", "parallel")),   # v7x: both TCs share an image
    )(z, mu, x_flat)


def psp_forward_nhwc(x_flat_bf16, fused, *, tile_hw=None):
    """x_flat_bf16: (N, H*W, C) bf16.  Returns (N, H*W, 4*Co + C) bf16."""
    n, hw, c = x_flat_bf16.shape
    nbco = fused["w"].shape[1]
    r = fused["mp"].shape[0]
    c_out = nbco + c

    if tile_hw is None:
        tile_hw = _pick_hw_tile(hw, c, c_out, r)
    assert hw % tile_hw == 0 and (tile_hw == hw or tile_hw % 128 == 0), \
        "tile_hw must divide H*W and be a multiple of 128 (or the full H*W)"

    try:
        z = _call_pool_conv(x_flat_bf16, fused["mp"], fused["w"], fused["shift_mask"],
                            tile_hw, single_buffer_consts=True)
    except Exception:
        # Fallback for JAX versions without BlockSpec.pipeline_mode / pl.Buffered.
        z = _call_pool_conv(x_flat_bf16, fused["mp"], fused["w"], fused["shift_mask"],
                            tile_hw, single_buffer_consts=False)

    return _call_upsample_concat(z, fused["mu"], x_flat_bf16, tile_hw)


def psp_module_forward(x_nchw, fused, *, tile_hw=None):
    """PyTorch-semantics adapter: NCHW f32 in -> NCHW bf16 out (concat of branches + x)."""
    # TODO(synk): in a real model keep activations NHWC end-to-end; at production sizes
    # these full-tensor transposes cost as much HBM traffic as the fused kernels.
    n, c, h, w = x_nchw.shape
    x_flat = jnp.transpose(x_nchw, (0, 2, 3, 1)).reshape(n, h * w, c).astype(jnp.bfloat16)
    out = psp_forward_nhwc(x_flat, fused, tile_hw=tile_hw)
    c_out = out.shape[-1]
    return jnp.transpose(out.reshape(n, h, w, c_out), (0, 3, 1, 2))


# --------------------------- deterministic parameters --------------------------- #
def build_branch_params(key, c, sizes):
    """Per-branch torch-style parameters: conv weight (Co, C) and bias (Co,)."""
    co = c // len(sizes)
    branches = []
    for s in sizes:
        key, kw, kb = jax.random.split(key, 3)
        conv_w = jax.random.normal(kw, (co, c), jnp.float32) * 0.1   # (Co, C, 1, 1) squeezed
        conv_b = jax.random.normal(kb, (co,), jnp.float32) * 0.1
        branches.append(dict(size=s, conv_w=conv_w, conv_b=conv_b))
    return branches


def fuse_params(branches, h, w, r_pad_to=64):
    """Build the fused/stacked host-side matrices consumed by the kernels."""
    sizes = [int(b["size"]) for b in branches]
    co, c = branches[0]["conv_w"].shape
    nb = len(branches)
    hw = h * w
    offs = np.cumsum([0] + [s * s for s in sizes])
    r_raw = int(offs[-1])                                    # sum(s*s) = 50 for (1,2,3,6)
    r = max(r_pad_to, -(-r_raw // 8) * 8)                    # pad R -> 64 (sublane friendly)

    mp_all = np.zeros((r, hw), np.float64)                   # stacked adaptive-pool factors
    mu_all = np.zeros((hw, r), np.float64)                   # stacked bilinear-up factors
    w_big = np.zeros((c, nb * co), np.float64)               # concatenated 1x1 conv weights
    shift_mask = np.full((r, nb * co), NEG_BIG, np.float64)  # bias on-block, -1e30 off-block

    for b, br in enumerate(branches):
        s = int(br["size"])
        r0, r1 = int(offs[b]), int(offs[b + 1])
        c0, c1 = b * co, (b + 1) * co
        mp_all[r0:r1] = np.kron(adaptive_pool_matrix(s, h), adaptive_pool_matrix(s, w))
        mu_all[:, r0:r1] = np.kron(bilinear_up_matrix(h, s), bilinear_up_matrix(w, s))
        # BatchNorm2d (eval, fresh stats) fold; Identity norm for pool_size == 1.
        bn_scale = 1.0 / np.sqrt(1.0 + BN_EPS) if s > 1 else 1.0
        w_big[:, c0:c1] = np.asarray(br["conv_w"], np.float64).T * bn_scale
        shift_mask[r0:r1, c0:c1] = np.asarray(br["conv_b"], np.float64) * bn_scale

    # NOTE: mp in bf16 carries ~0.4% relative rounding on the 1/window weights; keep it in
    # f32 (or integer counts + post-divide) if tighter than ~1e-2 end-to-end accuracy matters.
    return dict(
        mp=jnp.asarray(mp_all, jnp.bfloat16),
        mu=jnp.asarray(mu_all, jnp.bfloat16),
        w=jnp.asarray(w_big, jnp.bfloat16),
        shift_mask=jnp.asarray(shift_mask, jnp.float32),
    )


# ------------------------------ numpy reference ------------------------------ #
def ref_psp_forward_nchw(x_nchw, branches):
    x = np.transpose(np.asarray(x_nchw, dtype=np.float64), (0, 2, 3, 1))
    n, h, w, c = x.shape
    pieces = []
    for br in branches:
        s = int(br["size"])
        wc = np.asarray(br["conv_w"], np.float64).T          # (C, Co)
        bias = np.asarray(br["conv_b"], np.float64)
        bn_scale = 1.0 / np.sqrt(1.0 + BN_EPS) if s > 1 else 1.0
        pooled = np.zeros((n, s, s, c))
        for i in range(s):
            h0 = (i * h) // s
            h1 = -(-((i + 1) * h) // s)
            for j in range(s):
                w0 = (j * w) // s
                w1 = -(-((j + 1) * w) // s)
                pooled[:, i, j] = x[:, h0:h1, w0:w1].mean(axis=(1, 2))
        z = np.maximum((pooled @ wc + bias) * bn_scale, 0.0)
        co = z.shape[-1]
        out = np.zeros((n, h, w, co))
        for oh in range(h):
            sy = oh * (s - 1) / (h - 1) if h > 1 else 0.0
            y0 = int(np.floor(sy)); y1 = min(y0 + 1, s - 1); wy = sy - y0
            for ow in range(w):
                sx = ow * (s - 1) / (w - 1) if w > 1 else 0.0
                x0 = int(np.floor(sx)); x1 = min(x0 + 1, s - 1); wx = sx - x0
                out[:, oh, ow] = ((1 - wy) * (1 - wx) * z[:, y0, x0]
                                  + (1 - wy) * wx * z[:, y0, x1]
                                  + wy * (1 - wx) * z[:, y1, x0]
                                  + wy * wx * z[:, y1, x1])
        pieces.append(out)
    pieces.append(x)
    return np.transpose(np.concatenate(pieces, axis=-1), (0, 3, 1, 2))


# ----------------------------------- main ----------------------------------- #
if __name__ == "__main__":
    # in_channels must be divisible by len(SIZES).  (Production: keep C and 4*Co
    # multiples of 128 for lane-dense writes; that invariant holds at e.g. C=2048.)
    N, C, H, W = 2, 8, 16, 16

    root = jax.random.PRNGKey(0)
    k_x, k_p = jax.random.split(root)
    x = jax.random.normal(k_x, (N, C, H, W), jnp.float32)   # PyTorch-style NCHW input

    branches = build_branch_params(k_p, C, SIZES)
    fused = fuse_params(branches, H, W)

    # tile_hw=128 -> 2 HW tiles per image: exercises the pool-accumulate reduction grid
    # and the tiled upsample/writeback phase even at this toy size.
    y = psp_module_forward(x, fused, tile_hw=128)
    y = jax.block_until_ready(y)

    co = C // len(SIZES)
    assert y.shape == (N, C + len(SIZES) * co, H, W), y.shape

    y_ref = ref_psp_forward_nchw(np.asarray(x), branches)
    np.testing.assert_allclose(np.asarray(y, np.float64), y_ref, rtol=2e-2, atol=2e-2)

    print("KERNEL_OK")
</pallas_src>

<mosaic_0001>
module attributes {stable_mosaic.version = 11 : i64} {
  func.func @_pool_conv_kernel(%arg0: i32, %arg1: i32, %arg2: memref<1x128x8xbf16, #tpu.memory_space<vmem>>, %arg3: memref<64x128xbf16, #tpu.memory_space<vmem>>, %arg4: memref<8x8xbf16, #tpu.memory_space<vmem>>, %arg5: memref<64x8xf32, #tpu.memory_space<vmem>>, %arg6: memref<1x64x8xbf16, #tpu.memory_space<vmem>>, %arg7: memref<64x8xf32, #tpu.memory_space<vmem>>) attributes {dimension_semantics = [#tpu.dimension_semantics<parallel>, #tpu.dimension_semantics<arbitrary>], iteration_bounds = array<i64: 2, 2>, scalar_prefetch = 0 : i64, scratch_operands = 1 : i64, tpu.core_type = #tpu.core_type<tc>, window_params = [{transform_indices = @transform_0, window_bounds = array<i64: 1, 128, 8>}, {transform_indices = @transform_1, window_bounds = array<i64: 64, 128>}, {pipeline_mode = #tpu.pipeline_mode<synchronous>, transform_indices = @transform_2, window_bounds = array<i64: 8, 8>}, {pipeline_mode = #tpu.pipeline_mode<synchronous>, transform_indices = @transform_3, window_bounds = array<i64: 64, 8>}, {transform_indices = @transform_4, window_bounds = array<i64: 1, 64, 8>}]} {
    %c0_i32 = arith.constant 0 : i32
    %0 = arith.cmpi eq, %arg1, %c0_i32 : i32
    %1 = arith.extui %0 : i1 to i32
    %c0_i32_0 = arith.constant 0 : i32
    %2 = arith.cmpi ne, %1, %c0_i32_0 : i32
    scf.if %2 {
      %cst_10 = arith.constant 0.000000e+00 : f32
      %13 = vector.broadcast %cst_10 : f32 to vector<64x8xf32>
      %c0_11 = arith.constant 0 : index
      %c0_12 = arith.constant 0 : index
      %14 = vector.load %arg7[%c0_11, %c0_12] : memref<64x8xf32, #tpu.memory_space<vmem>>, vector<64x8xf32>
      tpu.vector_store %arg7[%c0_11, %c0_12], %13 {strides = array<i32>} : memref<64x8xf32, #tpu.memory_space<vmem>>, vector<64x8xf32>,
    } else {
    }
    %c0 = arith.constant 0 : index
    %c0_1 = arith.constant 0 : index
    %3 = vector.load %arg7[%c0, %c0_1] : memref<64x8xf32, #tpu.memory_space<vmem>>, vector<64x8xf32>
    %c0_2 = arith.constant 0 : index
    %c0_3 = arith.constant 0 : index
    %4 = vector.load %arg3[%c0_2, %c0_3] : memref<64x128xbf16, #tpu.memory_space<vmem>>, vector<64x128xbf16>
    %c0_4 = arith.constant 0 : index
    %c0_5 = arith.constant 0 : index
    %c0_6 = arith.constant 0 : index
    %5 = vector.load %arg2[%c0_4, %c0_5, %c0_6] : memref<1x128x8xbf16, #tpu.memory_space<vmem>>, vector<1x128x8xbf16>
    %6 = vector.shape_cast %5 : vector<1x128x8xbf16> to vector<128x8xbf16>
    %cst = arith.constant dense<0.000000e+00> : vector<64x8xf32>
    %7 = tpu.matmul %4, %6, %cst {dimension_numbers = #tpu.dot_dimension_numbers<[1], [0], [0], [1], [0, 0, 1, 1], [], []>} : vector<64x128xbf16>, vector<128x8xbf16>, vector<64x8xf32> -> vector<64x8xf32>
    %8 = arith.addf %3, %7 : vector<64x8xf32>
    %c0_7 = arith.constant 0 : index
    %c0_8 = arith.constant 0 : index
    %9 = vector.load %arg7[%c0_7, %c0_8] : memref<64x8xf32, #tpu.memory_space<vmem>>, vector<64x8xf32>
    tpu.vector_store %arg7[%c0_7, %c0_8], %8 {strides = array<i32>} : memref<64x8xf32, #tpu.memory_space<vmem>>, vector<64x8xf32>,
    %c1_i32 = arith.constant 1 : i32
    %10 = arith.cmpi eq, %arg1, %c1_i32 : i32
    %11 = arith.extui %10 : i1 to i32
    %c0_i32_9 = arith.constant 0 : i32
    %12 = arith.cmpi ne, %11, %c0_i32_9 : i32
    scf.if %12 {
      %c0_10 = arith.constant 0 : index
      %c0_11 = arith.constant 0 : index
      %13 = vector.load %arg7[%c0_10, %c0_11] : memref<64x8xf32, #tpu.memory_space<vmem>>, vector<64x8xf32>
      %14 = arith.truncf %13 : vector<64x8xf32> to vector<64x8xbf16>
      %c0_12 = arith.constant 0 : index
      %c0_13 = arith.constant 0 : index
      %15 = vector.load %arg4[%c0_12, %c0_13] : memref<8x8xbf16, #tpu.memory_space<vmem>>, vector<8x8xbf16>
      %cst_14 = arith.constant dense<0.000000e+00> : vector<64x8xf32>
      %16 = tpu.matmul %14, %15, %cst_14 {dimension_numbers = #tpu.dot_dimension_numbers<[1], [0], [0], [1], [0, 0, 1, 1], [], []>} : vector<64x8xbf16>, vector<8x8xbf16>, vector<64x8xf32> -> vector<64x8xf32>
      %c0_15 = arith.constant 0 : index
      %c0_16 = arith.constant 0 : index
      %17 = vector.load %arg5[%c0_15, %c0_16] : memref<64x8xf32, #tpu.memory_space<vmem>>, vector<64x8xf32>
      %18 = arith.addf %16, %17 : vector<64x8xf32>
      %cst_17 = arith.constant 0.000000e+00 : f32
      %19 = vector.broadcast %cst_17 : f32 to vector<64x8xf32>
      %20 = arith.maximumf %18, %19 : vector<64x8xf32>
      %21 = arith.truncf %20 : vector<64x8xf32> to vector<64x8xbf16>
      %c0_18 = arith.constant 0 : index
      %c0_19 = arith.constant 0 : index
      %c0_20 = arith.constant 0 : index
      %22 = vector.load %arg6[%c0_18, %c0_19, %c0_20] : memref<1x64x8xbf16, #tpu.memory_space<vmem>>, vector<1x64x8xbf16>
      %23 = vector.shape_cast %22 : vector<1x64x8xbf16> to vector<64x8xbf16>
      %24 = vector.shape_cast %21 : vector<64x8xbf16> to vector<1x64x8xbf16>
      tpu.vector_store %arg6[%c0_18, %c0_19, %c0_20], %24 {strides = array<i32>} : memref<1x64x8xbf16, #tpu.memory_space<vmem>>, vector<1x64x8xbf16>,
    } else {
    }
    return
  }
  func.func @transform_0(%arg0: i32, %arg1: i32) -> (i32, i32, i32) {
    %c0_i32 = arith.constant 0 : i32
    %c0_i32_0 = arith.constant 0 : i32
    return %arg0, %arg1, %c0_i32 : i32, i32, i32
  }
  func.func @transform_1(%arg0: i32, %arg1: i32) -> (i32, i32) {
    %c0_i32 = arith.constant 0 : i32
    %c0_i32_0 = arith.constant 0 : i32
    return %c0_i32, %arg1 : i32, i32
  }
  func.func @transform_2(%arg0: i32, %arg1: i32) -> (i32, i32) {
    %c0_i32 = arith.constant 0 : i32
    %c0_i32_0 = arith.constant 0 : i32
    %c0_i32_1 = arith.constant 0 : i32
    return %c0_i32, %c0_i32_0 : i32, i32
  }
  func.func @transform_3(%arg0: i32, %arg1: i32) -> (i32, i32) {
    %c0_i32 = arith.constant 0 : i32
    %c0_i32_0 = arith.constant 0 : i32
    %c0_i32_1 = arith.constant 0 : i32
    return %c0_i32, %c0_i32_0 : i32, i32
  }
  func.func @transform_4(%arg0: i32, %arg1: i32) -> (i32, i32, i32) {
    %c0_i32 = arith.constant 0 : i32
    %c0_i32_0 = arith.constant 0 : i32
    %c0_i32_1 = arith.constant 0 : i32
    return %arg0, %c0_i32, %c0_i32_0 : i32, i32, i32
  }
}

module attributes {stable_mosaic.version = 11 : i64} {
  func.func @_pool_conv_kernel(%arg0: i32, %arg1: i32, %arg2: memref<1x128x8xbf16, #tpu.memory_space<vmem>>, %arg3: memref<64x128xbf16, #tpu.memory_space<vmem>>, %arg4: memref<8x8xbf16, #tpu.memory_space<vmem>>, %arg5: memref<64x8xf32, #tpu.memory_space<vmem>>, %arg6: memref<1x64x8xbf16, #tpu.memory_space<vmem>>, %arg7: memref<64x8xf32, #tpu.memory_space<vmem>>) attributes {dimension_semantics = [#tpu.dimension_semantics<parallel>, #tpu.dimension_semantics<arbitrary>], iteration_bounds = array<i64: 2, 2>, scalar_prefetch = 0 : i64, scratch_operands = 1 : i64, tpu.core_type = #tpu.core_type<tc>, window_params = [{transform_indices = @transform_0, window_bounds = array<i64: 1, 128, 8>}, {transform_indices = @transform_1, window_bounds = array<i64: 64, 128>}, {pipeline_mode = #tpu.pipeline_mode<synchronous>, transform_indices = @transform_2, window_bounds = array<i64: 8, 8>}, {pipeline_mode = #tpu.pipeline_mode<synchronous>, transform_indices = @transform_3, window_bounds = array<i64: 64, 8>}, {transform_indices = @transform_4, window_bounds = array<i64: 1, 64, 8>}]} {
    %c0_i32 = arith.constant 0 : i32
    %0 = arith.cmpi eq, %arg1, %c0_i32 : i32
    %1 = arith.extui %0 : i1 to i32
    %c0_i32_0 = arith.constant 0 : i32
    %2 = arith.cmpi ne, %1, %c0_i32_0 : i32
    scf.if %2 {
      %cst_10 = arith.constant 0.000000e+00 : f32
      %13 = vector.broadcast %cst_10 : f32 to vector<64x8xf32>
      %c0_11 = arith.constant 0 : index
      %c0_12 = arith.constant 0 : index
      %14 = vector.load %arg7[%c0_11, %c0_12] : memref<64x8xf32, #tpu.memory_space<vmem>>, vector<64x8xf32>
      tpu.vector_store %arg7[%c0_11, %c0_12], %13 {strides = array<i32>} : memref<64x8xf32, #tpu.memory_space<vmem>>, vector<64x8xf32>,
    } else {
    }
    %c0 = arith.constant 0 : index
    %c0_1 = arith.constant 0 : index
    %3 = vector.load %arg7[%c0, %c0_1] : memref<64x8xf32, #tpu.memory_space<vmem>>, vector<64x8xf32>
    %c0_2 = arith.constant 0 : index
    %c0_3 = arith.constant 0 : index
    %4 = vector.load %arg3[%c0_2, %c0_3] : memref<64x128xbf16, #tpu.memory_space<vmem>>, vector<64x128xbf16>
    %c0_4 = arith.constant 0 : index
    %c0_5 = arith.constant 0 : index
    %c0_6 = arith.constant 0 : index
    %5 = vector.load %arg2[%c0_4, %c0_5, %c0_6] : memref<1x128x8xbf16, #tpu.memory_space<vmem>>, vector<1x128x8xbf16>
    %6 = vector.shape_cast %5 : vector<1x128x8xbf16> to vector<128x8xbf16>
    %cst = arith.constant dense<0.000000e+00> : vector<64x8xf32>
    %7 = tpu.matmul %4, %6, %cst {dimension_numbers = #tpu.dot_dimension_numbers<[1], [0], [0], [1], [0, 0, 1, 1], [], []>} : vector<64x128xbf16>, vector<128x8xbf16>, vector<64x8xf32> -> vector<64x8xf32>
    %8 = arith.addf %3, %7 : vector<64x8xf32>
    %c0_7 = arith.constant 0 : index
    %c0_8 = arith.constant 0 : index
    %9 = vector.load %arg7[%c0_7, %c0_8] : memref<64x8xf32, #tpu.memory_space<vmem>>, vector<64x8xf32>
    tpu.vector_store %arg7[%c0_7, %c0_8], %8 {strides = array<i32>} : memref<64x8xf32, #tpu.memory_space<vmem>>, vector<64x8xf32>,
    %c1_i32 = arith.constant 1 : i32
    %10 = arith.cmpi eq, %arg1, %c1_i32 : i32
    %11 = arith.extui %10 : i1 to i32
    %c0_i32_9 = arith.constant 0 : i32
    %12 = arith.cmpi ne, %11, %c0_i32_9 : i32
    scf.if %12 {
      %c0_10 = arith.constant 0 : index
      %c0_11 = arith.constant 0 : index
      %13 = vector.load %arg7[%c0_10, %c0_11] : memref<64x8xf32, #tpu.memory_space<vmem>>, vector<64x8xf32>
      %14 = arith.truncf %13 : vector<64x8xf32> to vector<64x8xbf16>
      %c0_12 = arith.constant 0 : index
      %c0_13 = arith.constant 0 : index
      %15 = vector.load %arg4[%c0_12, %c0_13] : memref<8x8xbf16, #tpu.memory_space<vmem>>, vector<8x8xbf16>
      %cst_14 = arith.constant dense<0.000000e+00> : vector<64x8xf32>
      %16 = tpu.matmul %14, %15, %cst_14 {dimension_numbers = #tpu.dot_dimension_numbers<[1], [0], [0], [1], [0, 0, 1, 1], [], []>} : vector<64x8xbf16>, vector<8x8xbf16>, vector<64x8xf32> -> vector<64x8xf32>
      %c0_15 = arith.constant 0 : index
      %c0_16 = arith.constant 0 : index
      %17 = vector.load %arg5[%c0_15, %c0_16] : memref<64x8xf32, #tpu.memory_space<vmem>>, vector<64x8xf32>
      %18 = arith.addf %16, %17 : vector<64x8xf32>
      %cst_17 = arith.constant 0.000000e+00 : f32
      %19 = vector.broadcast %cst_17 : f32 to vector<64x8xf32>
      %20 = arith.maximumf %18, %19 : vector<64x8xf32>
      %21 = arith.truncf %20 : vector<64x8xf32> to vector<64x8xbf16>
      %c0_18 = arith.constant 0 : index
      %c0_19 = arith.constant 0 : index
      %c0_20 = arith.constant 0 : index
      %22 = vector.load %arg6[%c0_18, %c0_19, %c0_20] : memref<1x64x8xbf16, #tpu.memory_space<vmem>>, vector<1x64x8xbf16>
      %23 = vector.shape_cast %22 : vector<1x64x8xbf16> to vector<64x8xbf16>
      %24 = vector.shape_cast %21 : vector<64x8xbf16> to vector<1x64x8xbf16>
      tpu.vector_store %arg6[%c0_18, %c0_19, %c0_20], %24 {strides = array<i32>} : memref<1x64x8xbf16, #tpu.memory_space<vmem>>, vector<1x64x8xbf16>,
    } else {
    }
    return
  }
  func.func @transform_0(%arg0: i32, %arg1: i32) -> (i32, i32, i32) {
    %c0_i32 = arith.constant 0 : i32
    %c0_i32_0 = arith.constant 0 : i32
    return %arg0, %arg1, %c0_i32 : i32, i32, i32
  }
  func.func @transform_1(%arg0: i32, %arg1: i32) -> (i32, i32) {
    %c0_i32 = arith.constant 0 : i32
    %c0_i32_0 = arith.constant 0 : i32
    return %c0_i32, %arg1 : i32, i32
  }
  func.func @transform_2(%arg0: i32, %arg1: i32) -> (i32, i32) {
    %c0_i32 = arith.constant 0 : i32
    %c0_i32_0 = arith.constant 0 : i32
    %c0_i32_1 = arith.constant 0 : i32
    return %c0_i32, %c0_i32_0 : i32, i32
  }
  func.func @transform_3(%arg0: i32, %arg1: i32) -> (i32, i32) {
    %c0_i32 = arith.constant 0 : i32
    %c0_i32_0 = arith.constant 0 : i32
    %c0_i32_1 = arith.constant 0 : i32
    return %c0_i32, %c0_i32_0 : i32, i32
  }
  func.func @transform_4(%arg0: i32, %arg1: i32) -> (i32, i32, i32) {
    %c0_i32 = arith.constant 0 : i32
    %c0_i32_0 = arith.constant 0 : i32
    %c0_i32_1 = arith.constant 0 : i32
    return %arg0, %c0_i32, %c0_i32_0 : i32, i32, i32
  }
}

</mosaic_0001>

<llo_original>
// kernel: tpu_custom_call.1
$region0: #{tpu_custom_call.1}
  #allocation0 [shape = 'u32[]', space=smem, size = 0x4, offset = 0x4, fixed_abs, tag = 'smem constant byte address 0x4 - core index']
  #allocation1 [shape = 'u32[144,128]{1,0:T(1,128)}', space=vmem, size = 0x12000, scoped, tag = 'internal scratch']
  #allocation2 [shape = 'f32[64,8]{1,0:T(8,128)}', space=vmem, size = 0x8000, scoped, tag = 'scratch operand']
  %s0 = inlined_call_operand.vmem [shape: bf16[2,256,8], index: 0, kind: input, shape index: {}]
  %s1 = inlined_call_operand.vmem [shape: bf16[64,256], index: 1, kind: input, shape index: {}]
  %s2 = inlined_call_operand.vmem [shape: bf16[8,8], index: 2, kind: input, shape index: {}]
  %s3 = inlined_call_operand.vmem [shape: f32[64,8], index: 3, kind: input, shape index: {}]
  %s4 = inlined_call_operand.vmem [shape: bf16[2,64,8], index: 4, kind: output, shape index: {}]
  %s5 = sld [smem:[#allocation0]]
  $region98: #{tpu_custom_call.1} parent=0
    _
  %s7 = ssub.s32 1, %s5
  %s8 = scalar_select 0, %s7, %s5
  $region1: #{tpu_custom_call.1} parent=0
    #allocation3 [shape = 'u8[32768]{0}', space=vmem, size = 0x8000, scoped, tag = 'input window, operand 1']
    loop: start=0, step=1, limit=6
    $region2: #{tpu_custom_call.1} parent=1 // loop_pre_header
      _
    $region3: #{tpu_custom_call.1} parent=1 // loop_header
      %s10 = sphi 0, %s14
      %p11 = scmp.ge.s32.totalorder %s10, 6
      %s17 = sphi 0, %s29
      %s18 = sphi 0, %s25
      %s19 = sphi 0, %s17
      %s20 = sphi 0, %s18
      %s21 = sphi 0, %s19
      %s22 = sphi 0, %s20
      %s34 = sphi 0, %s36
      %s37 = sphi 0, %s34
      %s38 = sphi 0, %s37
      %s54 = sphi 0, %s38
      %s60 = sphi 0, %s62
      %s63 = sphi 0, %s60
      %s64 = sphi 0, %s63
      %s80 = sphi 0, %s64
      %s84 = sphi 0, %s84
      %s86 = sphi 0, %s84
      %s87 = sphi 0, %s86
      %s101 = sphi 0, %s87
      %s105 = sphi 0, %s105
      %s107 = sphi 0, %s105
      %s108 = sphi 0, %s107
      %s122 = sphi 0, %s108
      %s128 = sphi 0, %s130
      %s131 = sphi 0, %s128
      %s132 = sphi 0, %s131
      %s148 = sphi 0, %s132
    $region4: #{tpu_custom_call.1} parent=1 // loop_header_branch
      %13 = sbr.rel (%p11) target = $region8
    $region5: #{tpu_custom_call.1} parent=1 // loop_body
      %s15 = ssub.s32 %s10, 1
      %s16 = ssub.s32 %s10, 2
      %s23 = sadd.s32 1, %s18
      %p24 = scmp.ge.s32.totalorder %s23, 2
      %s25 = scalar_select %p24, 0, %s23
      %s26 = sadd.s32 1, %s17
      %s27 = scalar_select %p24, %s26, %s17
      %p28 = scmp.ge.s32.totalorder %s27, 2
      %s29 = scalar_select %p28, 0, %s27
      %s30 = ssub.s32 %s17, %s29
      %s31 = ssub.s32 %s18, %s25
      %s32 = sor.u32 %s30, %s31
      %p33 = scmp.eq.s32.totalorder %s32, 0
      %s35 = sadd.s32 %s34, 1
      %s36 = scalar_select %p33, %s34, %s35
      %p39 = pneg %p33
      %p40 = scmp.eq.s32.totalorder %s10, 3
      %p41 = por %p39, %p40
      %p42 = scmp.ne.s32.totalorder %s34, %s37
      %p43 = scmp.eq.s32.totalorder %s10, 0
      %p44 = por %p42, %p43
      %p45 = scmp.ne.s32.totalorder %s34, %s37
      %p46 = scmp.eq.s32.totalorder %s15, 3
      %p47 = por %p45, %p46
      %p48 = scmp.ne.s32.totalorder %s37, %s38
      %p49 = scmp.eq.s32.totalorder %s15, 0
      %p50 = por %p48, %p49
      %p51 = scmp.ne.s32.totalorder %s37, %s38
      %p52 = scmp.eq.s32.totalorder %s16, 3
      %p53 = por %p51, %p52
      %p55 = scmp.ne.s32.totalorder %s38, %s54
      %p56 = scmp.eq.s32.totalorder %s16, 0
      %p57 = por %p55, %p56
      %s58 = ssub.s32 %s18, %s25
      %p59 = scmp.eq.s32.totalorder %s58, 0
      %s61 = sadd.s32 %s60, 1
      %s62 = scalar_select %p59, %s60, %s61
      %p65 = pneg %p59
      %p66 = scmp.eq.s32.totalorder %s10, 3
      %p67 = por %p65, %p66
      %p68 = scmp.ne.s32.totalorder %s60, %s63
      %p69 = scmp.eq.s32.totalorder %s10, 0
      %p70 = por %p68, %p69
      %p71 = scmp.ne.s32.totalorder %s60, %s63
      %p72 = scmp.eq.s32.totalorder %s15, 3
      %p73 = por %p71, %p72
      %p74 = scmp.ne.s32.totalorder %s63, %s64
      %p75 = scmp.eq.s32.totalorder %s15, 0
      %p76 = por %p74, %p75
      %p77 = scmp.ne.s32.totalorder %s63, %s64
      %p78 = scmp.eq.s32.totalorder %s16, 3
      %p79 = por %p77, %p78
      %p81 = scmp.ne.s32.totalorder %s64, %s80
      %p82 = scmp.eq.s32.totalorder %s16, 0
      %p83 = por %p81, %p82
      %s85 = sadd.s32 %s84, 1
      %p88 = scmp.eq.s32.totalorder %s10, 3
      %p89 = scmp.ne.s32.totalorder %s84, %s86
      %p90 = scmp.eq.s32.totalorder %s10, 0
      %p91 = por %p89, %p90
      %p92 = scmp.ne.s32.totalorder %s84, %s86
      %p93 = scmp.eq.s32.totalorder %s15, 3
      %p94 = por %p92, %p93
      %p95 = scmp.ne.s32.totalorder %s86, %s87
      %p96 = scmp.eq.s32.totalorder %s15, 0
      %p97 = por %p95, %p96
      %p98 = scmp.ne.s32.totalorder %s86, %s87
      %p99 = scmp.eq.s32.totalorder %s16, 3
      %p100 = por %p98, %p99
      %p102 = scmp.ne.s32.totalorder %s87, %s101
      %p103 = scmp.eq.s32.totalorder %s16, 0
      %p104 = por %p102, %p103
      %s106 = sadd.s32 %s105, 1
      %p109 = scmp.eq.s32.totalorder %s10, 3
      %p110 = scmp.ne.s32.totalorder %s105, %s107
      %p111 = scmp.eq.s32.totalorder %s10, 0
      %p112 = por %p110, %p111
      %p113 = scmp.ne.s32.totalorder %s105, %s107
      %p114 = scmp.eq.s32.totalorder %s15, 3
      %p115 = por %p113, %p114
      %p116 = scmp.ne.s32.totalorder %s107, %s108
      %p117 = scmp.eq.s32.totalorder %s15, 0
      %p118 = por %p116, %p117
      %p119 = scmp.ne.s32.totalorder %s107, %s108
      %p120 = scmp.eq.s32.totalorder %s16, 3
      %p121 = por %p119, %p120
      %p123 = scmp.ne.s32.totalorder %s108, %s122
      %p124 = scmp.eq.s32.totalorder %s16, 0
      %p125 = por %p123, %p124
      %s126 = ssub.s32 %s17, %s29
      %p127 = scmp.eq.s32.totalorder %s126, 0
      %s129 = sadd.s32 %s128, 1
      %s130 = scalar_select %p127, %s128, %s129
      %p133 = pneg %p127
      %p134 = scmp.eq.s32.totalorder %s10, 3
      %p135 = por %p133, %p134
      %p136 = scmp.ne.s32.totalorder %s128, %s131
      %p137 = scmp.eq.s32.totalorder %s10, 0
      %p138 = por %p136, %p137
      %p139 = scmp.ne.s32.totalorder %s128, %s131
      %p140 = scmp.eq.s32.totalorder %s15, 3
      %p141 = por %p139, %p140
      %p142 = scmp.ne.s32.totalorder %s131, %s132
      %p143 = scmp.eq.s32.totalorder %s15, 0
      %p144 = por %p142, %p143
      %p145 = scmp.ne.s32.totalorder %s131, %s132
      %p146 = scmp.eq.s32.totalorder %s16, 3
      %p147 = por %p145, %p146
      %p149 = scmp.ne.s32.totalorder %s132, %s148
      %p150 = scmp.eq.s32.totalorder %s16, 0
      %p151 = por %p149, %p150
      %p152 = scmp.le.s32.totalorder 1, %s10
      %p153 = scmp.lt.s32.totalorder %s10, 5
      %p154 = pnand %p152, %p153
      %p155 = pneg %p154
      // Predicated region
      $region9: #{tpu_custom_call.1} parent=5 // pred_check
        _
      $region10: #{tpu_custom_call.1} parent=5 // pred_check_branch
        %157 = sbr.rel (%p154) target = $region12
      $region11: #{tpu_custom_call.1} parent=5 // pred_region
        %s158 = ssub.s32 %s10, 1
        // Predicated region
        $region13: #{tpu_custom_call.1} parent=11 // pred_check
          %p159 = pneg %p97
        $region14: #{tpu_custom_call.1} parent=11 // pred_check_branch
          %161 = sbr.rel (%p159) target = $region16
        $region15: #{tpu_custom_call.1} parent=11 // pred_region
          _
        $region16: #{tpu_custom_call.1} parent=11 // pred_fallthru
          _
        // Predicated region
        $region17: #{tpu_custom_call.1} parent=11 // pred_check
          %p162 = pneg %p118
        $region18: #{tpu_custom_call.1} parent=11 // pred_check_branch
          %164 = sbr.rel (%p162) target = $region20
        $region19: #{tpu_custom_call.1} parent=11 // pred_region
          _
        $region20: #{tpu_custom_call.1} parent=11 // pred_fallthru
          _
      $region12: #{tpu_custom_call.1} parent=5 // pred_fallthru
        _
      %p165 = scmp.lt.s32.totalorder %s10, 4
      // Predicated region
      $region21: #{tpu_custom_call.1} parent=5 // pred_check
        %p166 = pneg %p165
      $region22: #{tpu_custom_call.1} parent=5 // pred_check_branch
        %168 = sbr.rel (%p166) target = $region24
      $region23: #{tpu_custom_call.1} parent=5 // pred_region
        // Predicated region
        $region25: #{tpu_custom_call.1} parent=23 // pred_check
          %p169 = pneg %p44
        $region26: #{tpu_custom_call.1} parent=23 // pred_check_branch
          %171 = sbr.rel (%p169) target = $region28
        $region27: #{tpu_custom_call.1} parent=23 // pred_region
          %s172 = smul.u32 16, %s18
          %p173 = scmp.lt.s32.totalorder %s17, 1
          %s174 = scalar_select %p173, %s17, 1
          %p175 = scmp.lt.s32.totalorder %s172, 31
          %s176 = scalar_select %p175, %s172, 31
          %s177 = smul.addr %s174, 32
          %s178 = sadd.s32 %s176, %s177
          %s179 = smul.addr %s178, 4
          %s180 = scalar_lea.vmem %s0, %s179
          %s181 = smul.u32 16, %s18
        $region28: #{tpu_custom_call.1} parent=23 // pred_fallthru
          _
        // Predicated region
        $region29: #{tpu_custom_call.1} parent=23 // pred_check
          %p182 = pneg %p70
        $region30: #{tpu_custom_call.1} parent=23 // pred_check_branch
          %184 = sbr.rel (%p182) target = $region32
        $region31: #{tpu_custom_call.1} parent=23 // pred_region
          %s185 = sand.u32 %s60, 1
          %s186 = sand.u32 %s60, 1
          %s187 = smul.addr %s186, 32
          %s188 = scalar_lea.vmem [#allocation3], %s187
          %s189 = smul.addr %s18, 4
          %s190 = scalar_lea.vmem %s1, %s189
          // Predicated region
          $region33: #{tpu_custom_call.1} parent=31 // pred_check
            _
          $region34: #{tpu_custom_call.1} parent=31 // pred_check_branch
            %192 = sbr.rel (0) target = $region36
          $region35: #{tpu_custom_call.1} parent=31 // pred_region
            // Predicated region
            $region37: #{tpu_custom_call.1} parent=35 // pred_check
              _
            $region38: #{tpu_custom_call.1} parent=35 // pred_check_branch
              %194 = sbr.rel target = $region40
            $region39: #{tpu_custom_call.1} parent=35 // pred_region
              // Predicated region
              $region52: #{tpu_custom_call.1} parent=39 // pred_check
                _
              $region53: #{tpu_custom_call.1} parent=39 // pred_check_branch
                %224 = sbr.rel (0) target = $region55
              $region54: #{tpu_custom_call.1} parent=39 // pred_region
                loop: start=0, step=1, limit=1
                $region56: #{tpu_custom_call.1} parent=54 // loop_pre_header
                  _
                $region57: #{tpu_custom_call.1} parent=54 // loop_header
                  %s226 = sphi 0, %s230
                  %p227 = scmp.ge.s32.totalorder %s226, 1
                  %s231 = sphi %s190, %s190
                  %s232 = sphi %s188, %s188
                $region58: #{tpu_custom_call.1} parent=54 // loop_header_branch
                  %229 = sbr.rel (%p227) target = $region62
                $region59: #{tpu_custom_call.1} parent=54 // loop_body
                  _
                $region60: #{tpu_custom_call.1} parent=54 // loop_footer
                  %s230 = sadd.s32 1, %s226
                $region61: #{tpu_custom_call.1} parent=54 // loop_footer_branch
                  %225 = sbr.rel target = $region57
                $region62: #{tpu_custom_call.1} parent=54 // loop_exit
                  _
                %s234 = ssub.s32 16, 1
                loop: start=0, step=1, limit=1
                $region63: #{tpu_custom_call.1} parent=54 // loop_pre_header
                  _
                $region64: #{tpu_custom_call.1} parent=54 // loop_header
                  %s236 = sphi 0, %s240
                  %p237 = scmp.ge.s32.totalorder %s236, 1
                  %s241 = sphi %s190, %s190
                  %s242 = sphi %s188, %s188
                $region65: #{tpu_custom_call.1} parent=54 // loop_header_branch
                  %239 = sbr.rel (%p237) target = $region69
                $region66: #{tpu_custom_call.1} parent=54 // loop_body
                  %v243 = vld [vmem:[%s241] sm:%s234]
                  %244 = vst [vmem:[%s242] sm:%s234] %v243
                  %v245 = vld [vmem:[%s241 + $0x8] sm:%s234]
                  %246 = vst [vmem:[%s242 + $0x4] sm:%s234] %v245
                  %v247 = vld [vmem:[%s241 + $0x10] sm:%s234]
                  %248 = vst [vmem:[%s242 + $0x8] sm:%s234] %v247
                  %v249 = vld [vmem:[%s241 + $0x18] sm:%s234]
                  %250 = vst [vmem:[%s242 + $0xc] sm:%s234] %v249
                  %v251 = vld [vmem:[%s241 + $0x20] sm:%s234]
                  %252 = vst [vmem:[%s242 + $0x10] sm:%s234] %v251
                  %v253 = vld [vmem:[%s241 + $0x28] sm:%s234]
                  %254 = vst [vmem:[%s242 + $0x14] sm:%s234] %v253
                  %v255 = vld [vmem:[%s241 + $0x30] sm:%s234]
                  %256 = vst [vmem:[%s242 + $0x18] sm:%s234] %v255
                  %v257 = vld [vmem:[%s241 + $0x38] sm:%s234]
                  %258 = vst [vmem:[%s242 + $0x1c] sm:%s234] %v257
                $region67: #{tpu_custom_call.1} parent=54 // loop_footer
                  %s240 = sadd.s32 1, %s236
                $region68: #{tpu_custom_call.1} parent=54 // loop_footer_branch
                  %235 = sbr.rel target = $region64
                $region69: #{tpu_custom_call.1} parent=54 // loop_exit
                  _
              $region55: #{tpu_custom_call.1} parent=39 // pred_fallthru
                _
            $region40: #{tpu_custom_call.1} parent=35 // pred_fallthru
              _
            // Predicated region
            $region41: #{tpu_custom_call.1} parent=35 // pred_check
              _
            $region42: #{tpu_custom_call.1} parent=35 // pred_check_branch
              %196 = sbr.rel (0) target = $region44
            $region43: #{tpu_custom_call.1} parent=35 // pred_region
              %s198 = ssub.s32 16, 1
              loop: start=0, step=1, limit=1
              $region45: #{tpu_custom_call.1} parent=43 // loop_pre_header
                _
              $region46: #{tpu_custom_call.1} parent=43 // loop_header
                %s200 = sphi 0, %s204
                %p201 = scmp.ge.s32.totalorder %s200, 1
                %s205 = sphi %s190, %s190
                %s206 = sphi %s188, %s188
              $region47: #{tpu_custom_call.1} parent=43 // loop_header_branch
                %203 = sbr.rel (%p201) target = $region51
              $region48: #{tpu_custom_call.1} parent=43 // loop_body
                %v207 = vld [vmem:[%s205] sm:%s198]
                %208 = vst [vmem:[%s206] sm:%s198] %v207
                %v209 = vld [vmem:[%s205 + $0x8] sm:%s198]
                %210 = vst [vmem:[%s206 + $0x4] sm:%s198] %v209
                %v211 = vld [vmem:[%s205 + $0x10] sm:%s198]
                %212 = vst [vmem:[%s206 + $0x8] sm:%s198] %v211
                %v213 = vld [vmem:[%s205 + $0x18] sm:%s198]
                %214 = vst [vmem:[%s206 + $0xc] sm:%s198] %v213
                %v215 = vld [vmem:[%s205 + $0x20] sm:%s198]
                %216 = vst [vmem:[%s206 + $0x10] sm:%s198] %v215
                %v217 = vld [vmem:[%s205 + $0x28] sm:%s198]
                %218 = vst [vmem:[%s206 + $0x14] sm:%s198] %v217
                %v219 = vld [vmem:[%s205 + $0x30] sm:%s198]
                %220 = vst [vmem:[%s206 + $0x18] sm:%s198] %v219
                %v221 = vld [vmem:[%s205 + $0x38] sm:%s198]
                %222 = vst [vmem:[%s206 + $0x1c] sm:%s198] %v221
              $region49: #{tpu_custom_call.1} parent=43 // loop_footer
                %s204 = sadd.s32 1, %s200
              $region50: #{tpu_custom_call.1} parent=43 // loop_footer_branch
                %199 = sbr.rel target = $region46
              $region51: #{tpu_custom_call.1} parent=43 // loop_exit
                _
            $region44: #{tpu_custom_call.1} parent=35 // pred_fallthru
              _
          $region36: #{tpu_custom_call.1} parent=31 // pred_fallthru
            _
          %259 = vnop
        $region32: #{tpu_custom_call.1} parent=23 // pred_fallthru
          _
      $region24: #{tpu_custom_call.1} parent=5 // pred_fallthru
        _
      %p260 = scmp.le.s32.totalorder 1, %s10
      %p261 = scmp.lt.s32.totalorder %s10, 5
      %p262 = pnand %p260, %p261
      %p263 = pneg %p262
      // Predicated region
      $region70: #{tpu_custom_call.1} parent=5 // pred_check
        _
      $region71: #{tpu_custom_call.1} parent=5 // pred_check_branch
        %265 = sbr.rel (%p262) target = $region73
      $region72: #{tpu_custom_call.1} parent=5 // pred_region
        %s266 = ssub.s32 %s10, 1
        %s267 = sand.u32 %s63, 1
        %s268 = sand.u32 %s63, 1
        %s269 = smul.addr %s268, 32
        %s270 = scalar_lea.vmem [#allocation3], %s269
        // Predicated region
        $region74: #{tpu_custom_call.1} parent=72 // pred_check
          %p271 = pneg %p76
        $region75: #{tpu_custom_call.1} parent=72 // pred_check_branch
          %273 = sbr.rel (%p271) target = $region77
        $region76: #{tpu_custom_call.1} parent=72 // pred_region
          _
        $region77: #{tpu_custom_call.1} parent=72 // pred_fallthru
          _
        %s274 = smul.u32 16, %s20
        %p275 = scmp.lt.s32.totalorder %s19, 1
        %s276 = scalar_select %p275, %s19, 1
        %p277 = scmp.lt.s32.totalorder %s274, 31
        %s278 = scalar_select %p277, %s274, 31
        %s279 = smul.addr %s276, 32
        %s280 = sadd.s32 %s278, %s279
        %s281 = smul.addr %s280, 4
        %s282 = scalar_lea.vmem %s0, %s281
        %p283 = pneg %p50
        %p284 = pneg %p47
        %s285 = sand.u32 %s63, 1
        %s286 = sand.u32 %s63, 1
        %s287 = smul.addr %s286, 32
        %s288 = scalar_lea.vmem [#allocation3], %s287
        %p289 = pneg %p76
        %p290 = pneg %p73
        %p291 = pneg %p97
        %p292 = pneg %p94
        %p293 = pneg %p118
        %p294 = pneg %p115
        %p295 = pneg %p144
        %p296 = pneg %p141
        %p297 = scmp.lt.s32.totalorder %s19, 1
        %s298 = scalar_select %p297, %s19, 1
        %s299 = smul.addr %s298, 8
        %s300 = smul.addr %s299, 4
        %s301 = scalar_lea.vmem %s4, %s300
        %s302 = smul.u32 16, %s20
        %p303 = scmp.lt.s32.totalorder %s19, 1
        %s304 = scalar_select %p303, %s19, 1
        %p305 = scmp.lt.s32.totalorder %s302, 31
        %s306 = scalar_select %p305, %s302, 31
        %s307 = smul.addr %s304, 32
        %s308 = sadd.s32 %s306, %s307
        %s309 = smul.addr %s308, 4
        %s310 = scalar_lea.vmem %s0, %s309
        %s311 = smul.u32 16, %s20
        %p312 = scmp.lt.s32.totalorder %s19, 1
        %s313 = scalar_select %p312, %s19, 1
        %s314 = smul.addr %s313, 8
        %s315 = smul.addr %s314, 4
        %s316 = scalar_lea.vmem %s4, %s315
        %p318 = scmp.eq.s32.totalorder %s20, 0
        // Predicated region
        $region78: #{tpu_custom_call.1} parent=72 // pred_check
          %p319 = pneg %p318
        $region79: #{tpu_custom_call.1} parent=72 // pred_check_branch
          %321 = sbr.rel (%p319) target = $region81
        $region80: #{tpu_custom_call.1} parent=72 // pred_region
          %vm322 = vcmask 64512
          %323 = vst.msk [vmem:[#allocation2] sm:$0xff] %vm322, 0.0
          %324 = vst.msk [vmem:[#allocation2 + $0x8] sm:$0xff] %vm322, 0.0
          %325 = vst.msk [vmem:[#allocation2 + $0x10] sm:$0xff] %vm322, 0.0
          %326 = vst.msk [vmem:[#allocation2 + $0x18] sm:$0xff] %vm322, 0.0
          %327 = vst.msk [vmem:[#allocation2 + $0x20] sm:$0xff] %vm322, 0.0
          %328 = vst.msk [vmem:[#allocation2 + $0x28] sm:$0xff] %vm322, 0.0
          %329 = vst.msk [vmem:[#allocation2 + $0x30] sm:$0xff] %vm322, 0.0
          %330 = vst.msk [vmem:[#allocation2 + $0x38] sm:$0xff] %vm322, 0.0
        $region81: #{tpu_custom_call.1} parent=72 // pred_fallthru
          _
        %v331 = vld [vmem:[#allocation2] sm:$0xff]
        %v332 = vld [vmem:[#allocation2 + $0x8] sm:$0xff]
        %v333 = vld [vmem:[#allocation2 + $0x10] sm:$0xff]
        %v334 = vld [vmem:[#allocation2 + $0x18] sm:$0xff]
        %v335 = vld [vmem:[#allocation2 + $0x20] sm:$0xff]
        %v336 = vld [vmem:[#allocation2 + $0x28] sm:$0xff]
        %v337 = vld [vmem:[#allocation2 + $0x30] sm:$0xff]
        %v338 = vld [vmem:[#allocation2 + $0x38] sm:$0xff]
        %v339 = vld [vmem:[%s270] sm:$0xf]
        %v340 = vld [vmem:[%s270 + $0x4] sm:$0xf]
        %v341 = vld [vmem:[%s270 + $0x8] sm:$0xf]
        %v342 = vld [vmem:[%s270 + $0xc] sm:$0xf]
        %v343 = vld [vmem:[%s270 + $0x10] sm:$0xf]
        %v344 = vld [vmem:[%s270 + $0x14] sm:$0xf]
        %v345 = vld [vmem:[%s270 + $0x18] sm:$0xf]
        %v346 = vld [vmem:[%s270 + $0x1c] sm:$0xf]
        %v347 = vld [vmem:[%s310] sm:$0xf]
        %v348 = vld [vmem:[%s310 + $0x4] sm:$0xf]
        %v349 = vld [vmem:[%s310 + $0x8] sm:$0xf]
        %v350 = vld [vmem:[%s310 + $0xc] sm:$0xf]
        %v351 = vld [vmem:[%s310 + $0x10] sm:$0xf]
        %v352 = vld [vmem:[%s310 + $0x14] sm:$0xf]
        %v353 = vld [vmem:[%s310 + $0x18] sm:$0xf]
        %v354 = vld [vmem:[%s310 + $0x1c] sm:$0xf]
        %v355 = vld [vmem:[%s310 + $0x20] sm:$0xf]
        %v356 = vld [vmem:[%s310 + $0x24] sm:$0xf]
        %v357 = vld [vmem:[%s310 + $0x28] sm:$0xf]
        %v358 = vld [vmem:[%s310 + $0x2c] sm:$0xf]
        %v359 = vld [vmem:[%s310 + $0x30] sm:$0xf]
        %v360 = vld [vmem:[%s310 + $0x34] sm:$0xf]
        %v361 = vld [vmem:[%s310 + $0x38] sm:$0xf]
        %v362 = vld [vmem:[%s310 + $0x3c] sm:$0xf]
        %v371 = vunpack.c.l.b16 %v339
        %v372 = vunpack.c.l.b16 %v340
        %v373 = vunpack.c.l.b16 %v341
        %v374 = vunpack.c.l.b16 %v342
        %v375 = vunpack.c.l.b16 %v343
        %v376 = vunpack.c.l.b16 %v344
        %v377 = vunpack.c.l.b16 %v345
        %v378 = vunpack.c.l.b16 %v346
        %v379 = vpack.c.b16 %v372, %v371
        %v380 = vpack.c.b16 %v374, %v373
        %v381 = vpack.c.b16 %v376, %v375
        %v382 = vpack.c.b16 %v378, %v377
        %v403 = vunpack.c.l.b16 %v347
        %v404 = vunpack.c.l.b16 %v348
        %v405 = vunpack.c.l.b16 %v349
        %v406 = vunpack.c.l.b16 %v350
        %v407 = vunpack.c.l.b16 %v351
        %v408 = vunpack.c.l.b16 %v352
        %v409 = vunpack.c.l.b16 %v353
        %v410 = vunpack.c.l.b16 %v354
        %v411 = vunpack.c.l.b16 %v355
        %v412 = vunpack.c.l.b16 %v356
        %v413 = vunpack.c.l.b16 %v357
        %v414 = vunpack.c.l.b16 %v358
        %v415 = vunpack.c.l.b16 %v359
        %v416 = vunpack.c.l.b16 %v360
        %v417 = vunpack.c.l.b16 %v361
        %v418 = vunpack.c.l.b16 %v362
        %v419 = vpack.c.b16 %v404, %v403
        %v420 = vpack.c.b16 %v406, %v405
        %v421 = vpack.c.b16 %v408, %v407
        %v422 = vpack.c.b16 %v410, %v409
        %v423 = vpack.c.b16 %v412, %v411
        %v424 = vpack.c.b16 %v414, %v413
        %v425 = vpack.c.b16 %v416, %v415
        %v426 = vpack.c.b16 %v418, %v417
        %435 = vmatprep.subr.bf16.mxu0 0
        %436 = vmatpush1.bf16.msra.mxu0 %v426
        %437 = vmatprep.subr.bf16.mxu0 0
        %438 = vmatpush1.bf16.msra.mxu0 %v425
        %439 = vmatprep.subr.bf16.mxu0 0
        %440 = vmatpush1.bf16.msra.mxu0 %v424
        %441 = vmatprep.subr.bf16.mxu0 0
        %442 = vmatpush1.bf16.msra.mxu0 %v423
        %443 = vmatprep.subr.bf16.mxu0 0
        %444 = vmatpush1.bf16.msra.mxu0 %v422
        %445 = vmatprep.subr.bf16.mxu0 0
        %446 = vmatpush1.bf16.msra.mxu0 %v421
        %447 = vmatprep.subr.bf16.mxu0 0
        %448 = vmatpush1.bf16.msra.mxu0 %v420
        %449 = vmatprep.subr.bf16.mxu0 0
        %450 = vmatpush1.bf16.msra.mxu0 %v419
        %451 = vmatprep.subr.bf16.mxu0 0
        %452 = vmatpush2.bf16.msra.mxu0 0
        %453 = vmatprep.subr.bf16.mxu0 0
        %454 = vmatpush2.bf16.msra.mxu0 0
        %455 = vmatprep.subr.bf16.mxu0 0
        %456 = vmatpush2.bf16.msra.mxu0 0
        %457 = vmatprep.subr.bf16.mxu0 0
        %458 = vmatpush2.bf16.msra.mxu0 0
        %459 = vmatprep.subr.bf16.mxu0 0
        %460 = vmatpush2.bf16.msra.mxu0 0
        %461 = vmatprep.subr.bf16.mxu0 0
        %462 = vmatpush2.bf16.msra.mxu0 0
        %463 = vmatprep.subr.bf16.mxu0 0
        %464 = vmatpush2.bf16.msra.mxu0 0
        %465 = vmatprep.subr.bf16.mxu0 0
        %466 = vmatpush2.bf16.msra.mxu0 0
        %467 = vmatprep.mubr.bf16.mxu0 0
        %468 = vmatmul.mubr.bf16.gmra.mxu0 %v379
        %v469 = vpop.f32.mrf.mxu0
        %v470 = vadd.f32 0.0, %v469
        %v471 = vpop.f32.mrf.mxu0
        %v472 = vpop.f32.mrf.mxu0
        %v473 = vadd.f32 0.0, %v472
        %v474 = vpop.f32.mrf.mxu0
        %475 = vmatprep.mubr.bf16.mxu0 0
        %476 = vmatmul.mubr.bf16.gmra.mxu0 %v380
        %v477 = vpop.f32.mrf.mxu0
        %v478 = vadd.f32 0.0, %v477
        %v479 = vpop.f32.mrf.mxu0
        %v480 = vpop.f32.mrf.mxu0
        %v481 = vadd.f32 0.0, %v480
        %v482 = vpop.f32.mrf.mxu0
        %483 = vmatprep.mubr.bf16.mxu0 0
        %484 = vmatmul.mubr.bf16.gmra.mxu0 %v381
        %v485 = vpop.f32.mrf.mxu0
        %v486 = vadd.f32 0.0, %v485
        %v487 = vpop.f32.mrf.mxu0
        %v488 = vpop.f32.mrf.mxu0
        %v489 = vadd.f32 0.0, %v488
        %v490 = vpop.f32.mrf.mxu0
        %491 = vmatprep.mubr.bf16.mxu0 0
        %492 = vmatmul.mubr.bf16.gmra.mxu0 %v382
        %v493 = vpop.f32.mrf.mxu0
        %v494 = vadd.f32 0.0, %v493
        %v495 = vpop.f32.mrf.mxu0
        %v496 = vpop.f32.mrf.mxu0
        %v497 = vadd.f32 0.0, %v496
        %v498 = vpop.f32.mrf.mxu0
        %499 = vdwg.mxu0
        %v500 = vadd.f32 %v331, %v470
        %v501 = vadd.f32 %v332, %v473
        %v502 = vadd.f32 %v333, %v478
        %v503 = vadd.f32 %v334, %v481
        %v504 = vadd.f32 %v335, %v486
        %v505 = vadd.f32 %v336, %v489
        %v506 = vadd.f32 %v337, %v494
        %v507 = vadd.f32 %v338, %v497
        %vm508 = vcmask 64512
        %509 = vst.msk [vmem:[#allocation2] sm:$0xff] %vm508, %v500
        %510 = vst.msk [vmem:[#allocation2 + $0x8] sm:$0xff] %vm508, %v501
        %511 = vst.msk [vmem:[#allocation2 + $0x10] sm:$0xff] %vm508, %v502
        %512 = vst.msk [vmem:[#allocation2 + $0x18] sm:$0xff] %vm508, %v503
        %513 = vst.msk [vmem:[#allocation2 + $0x20] sm:$0xff] %vm508, %v504
        %514 = vst.msk [vmem:[#allocation2 + $0x28] sm:$0xff] %vm508, %v505
        %515 = vst.msk [vmem:[#allocation2 + $0x30] sm:$0xff] %vm508, %v506
        %516 = vst.msk [vmem:[#allocation2 + $0x38] sm:$0xff] %vm508, %v507
        %p517 = scmp.eq.s32.totalorder %s20, 1
        // Predicated region
        $region82: #{tpu_custom_call.1} parent=72 // pred_check
          %p518 = pneg %p517
        $region83: #{tpu_custom_call.1} parent=72 // pred_check_branch
          %520 = sbr.rel (%p518) target = $region85
        $region84: #{tpu_custom_call.1} parent=72 // pred_region
          %v521 = vld [vmem:[#allocation2] sm:$0xff]
          %v522 = vld [vmem:[#allocation2 + $0x8] sm:$0xff]
          %v523 = vld [vmem:[#allocation2 + $0x10] sm:$0xff]
          %v524 = vld [vmem:[#allocation2 + $0x18] sm:$0xff]
          %v525 = vld [vmem:[#allocation2 + $0x20] sm:$0xff]
          %v526 = vld [vmem:[#allocation2 + $0x28] sm:$0xff]
          %v527 = vld [vmem:[#allocation2 + $0x30] sm:$0xff]
          %v528 = vld [vmem:[#allocation2 + $0x38] sm:$0xff]
          %v529 = vpack.c.bf16 %v522, %v521
          %v530 = vpack.c.bf16 %v524, %v523
          %v531 = vpack.c.bf16 %v526, %v525
          %v532 = vpack.c.bf16 %v528, %v527
          %v533 = vld [vmem:[%s2] sm:$0xf]
          %v534 = vld [vmem:[%s3] sm:$0xff]
          %v535 = vld [vmem:[%s3 + $0x8] sm:$0xff]
          %v536 = vld [vmem:[%s3 + $0x10] sm:$0xff]
          %v537 = vld [vmem:[%s3 + $0x18] sm:$0xff]
          %v538 = vld [vmem:[%s3 + $0x20] sm:$0xff]
          %v539 = vld [vmem:[%s3 + $0x28] sm:$0xff]
          %v540 = vld [vmem:[%s3 + $0x30] sm:$0xff]
          %v541 = vld [vmem:[%s3 + $0x38] sm:$0xff]
          %v543 = vsel %vm508, %v529, 0
          %v546 = vsel %vm508, %v530, 0
          %v549 = vsel %vm508, %v531, 0
          %v552 = vsel %vm508, %v532, 0
          %vm554 = vcmask 1043456
          %v556 = vsel %vm554, %v533, 0
          %558 = vmatprep.subr.bf16.mxu0 0
          %559 = vmatpush1.bf16.msra.mxu0 0
          %560 = vmatprep.subr.bf16.mxu0 0
          %561 = vmatpush1.bf16.msra.mxu0 0
          %562 = vmatprep.subr.bf16.mxu0 0
          %563 = vmatpush1.bf16.msra.mxu0 0
          %564 = vmatprep.subr.bf16.mxu0 0
          %565 = vmatpush1.bf16.msra.mxu0 0
          %566 = vmatprep.subr.bf16.mxu0 0
          %567 = vmatpush1.bf16.msra.mxu0 0
          %568 = vmatprep.subr.bf16.mxu0 0
          %569 = vmatpush1.bf16.msra.mxu0 0
          %570 = vmatprep.subr.bf16.mxu0 0
          %571 = vmatpush1.bf16.msra.mxu0 0
          %572 = vmatprep.subr.bf16.mxu0 0
          %573 = vmatpush1.bf16.msra.mxu0 %v556
          %574 = vmatprep.subr.bf16.mxu0 0
          %575 = vmatpush2.bf16.msra.mxu0 0
          %576 = vmatprep.subr.bf16.mxu0 0
          %577 = vmatpush2.bf16.msra.mxu0 0
          %578 = vmatprep.subr.bf16.mxu0 0
          %579 = vmatpush2.bf16.msra.mxu0 0
          %580 = vmatprep.subr.bf16.mxu0 0
          %581 = vmatpush2.bf16.msra.mxu0 0
          %582 = vmatprep.subr.bf16.mxu0 0
          %583 = vmatpush2.bf16.msra.mxu0 0
          %584 = vmatprep.subr.bf16.mxu0 0
          %585 = vmatpush2.bf16.msra.mxu0 0
          %586 = vmatprep.subr.bf16.mxu0 0
          %587 = vmatpush2.bf16.msra.mxu0 0
          %588 = vmatprep.subr.bf16.mxu0 0
          %589 = vmatpush2.bf16.msra.mxu0 0
          %590 = vmatprep.mubr.bf16.mxu0 0
          %591 = vmatmul.mubr.bf16.gmra.mxu0 %v543
          %v592 = vpop.f32.mrf.mxu0
          %v593 = vadd.f32 %v534, %v592
          %v594 = vpop.f32.mrf.mxu0
          %v595 = vpop.f32.mrf.mxu0
          %v596 = vadd.f32 %v535, %v595
          %v597 = vpop.f32.mrf.mxu0
          %598 = vmatprep.mubr.bf16.mxu0 0
          %599 = vmatmul.mubr.bf16.gmra.mxu0 %v546
          %v600 = vpop.f32.mrf.mxu0
          %v601 = vadd.f32 %v536, %v600
          %v602 = vpop.f32.mrf.mxu0
          %v603 = vpop.f32.mrf.mxu0
          %v604 = vadd.f32 %v537, %v603
          %v605 = vpop.f32.mrf.mxu0
          %606 = vmatprep.mubr.bf16.mxu0 0
          %607 = vmatmul.mubr.bf16.gmra.mxu0 %v549
          %v608 = vpop.f32.mrf.mxu0
          %v609 = vadd.f32 %v538, %v608
          %v610 = vpop.f32.mrf.mxu0
          %v611 = vpop.f32.mrf.mxu0
          %v612 = vadd.f32 %v539, %v611
          %v613 = vpop.f32.mrf.mxu0
          %614 = vmatprep.mubr.bf16.mxu0 0
          %615 = vmatmul.mubr.bf16.gmra.mxu0 %v552
          %v616 = vpop.f32.mrf.mxu0
          %v617 = vadd.f32 %v540, %v616
          %v618 = vpop.f32.mrf.mxu0
          %v619 = vpop.f32.mrf.mxu0
          %v620 = vadd.f32 %v541, %v619
          %v621 = vpop.f32.mrf.mxu0
          %622 = vdwg.mxu0
          %v623 = vmax.f32 %v593, 0.0
          %v624 = vmax.f32 %v596, 0.0
          %v625 = vmax.f32 %v601, 0.0
          %v626 = vmax.f32 %v604, 0.0
          %v627 = vmax.f32 %v609, 0.0
          %v628 = vmax.f32 %v612, 0.0
          %v629 = vmax.f32 %v617, 0.0
          %v630 = vmax.f32 %v620, 0.0
          %v631 = vpack.c.bf16 %v624, %v623
          %v632 = vpack.c.bf16 %v626, %v625
          %v633 = vpack.c.bf16 %v628, %v627
          %v634 = vpack.c.bf16 %v630, %v629
          %v639 = vunpack.c.l.b16 %v631
          %v640 = vunpack.c.h.b16 %v631
          %v641 = vunpack.c.l.b16 %v632
          %v642 = vunpack.c.h.b16 %v632
          %v643 = vunpack.c.l.b16 %v633
          %v644 = vunpack.c.h.b16 %v633
          %v645 = vunpack.c.l.b16 %v634
          %v646 = vunpack.c.h.b16 %v634
          %v647 = vpack.c.b16 %v639, %v639
          %v648 = vpack.c.b16 %v640, %v640
          %v649 = vpack.c.b16 %v641, %v641
          %v650 = vpack.c.b16 %v642, %v642
          %v651 = vpack.c.b16 %v643, %v643
          %v652 = vpack.c.b16 %v644, %v644
          %v653 = vpack.c.b16 %v645, %v645
          %v654 = vpack.c.b16 %v646, %v646
          %vm663 = vcmask 60416
          %664 = vst.msk [vmem:[%s316] sm:$0xf] %vm663, %v647
          %665 = vst.msk [vmem:[%s316 + $0x4] sm:$0xf] %vm663, %v648
          %666 = vst.msk [vmem:[%s316 + $0x8] sm:$0xf] %vm663, %v649
          %667 = vst.msk [vmem:[%s316 + $0xc] sm:$0xf] %vm663, %v650
          %668 = vst.msk [vmem:[%s316 + $0x10] sm:$0xf] %vm663, %v651
          %669 = vst.msk [vmem:[%s316 + $0x14] sm:$0xf] %vm663, %v652
          %670 = vst.msk [vmem:[%s316 + $0x18] sm:$0xf] %vm663, %v653
          %671 = vst.msk [vmem:[%s316 + $0x1c] sm:$0xf] %vm663, %v654
        $region85: #{tpu_custom_call.1} parent=72 // pred_fallthru
          _
        %p672 = scmp.lt.s32.totalorder %s19, 1
        %s673 = scalar_select %p672, %s19, 1
        %s674 = smul.addr %s673, 8
        %s675 = smul.addr %s674, 4
        %s676 = scalar_lea.vmem %s4, %s675
        // Predicated region
        $region86: #{tpu_custom_call.1} parent=72 // pred_check
          %p677 = pneg %p141
        $region87: #{tpu_custom_call.1} parent=72 // pred_check_branch
          %679 = sbr.rel (%p677) target = $region89
        $region88: #{tpu_custom_call.1} parent=72 // pred_region
          _
        $region89: #{tpu_custom_call.1} parent=72 // pred_fallthru
          _
      $region73: #{tpu_custom_call.1} parent=5 // pred_fallthru
        _
      %p680 = scmp.le.s32.totalorder 2, %s10
      // Predicated region
      $region90: #{tpu_custom_call.1} parent=5 // pred_check
        %p681 = pneg %p680
      $region91: #{tpu_custom_call.1} parent=5 // pred_check_branch
        %683 = sbr.rel (%p681) target = $region93
      $region92: #{tpu_custom_call.1} parent=5 // pred_region
        %s684 = ssub.s32 %s10, 2
        // Predicated region
        $region94: #{tpu_custom_call.1} parent=92 // pred_check
          %p685 = pneg %p147
        $region95: #{tpu_custom_call.1} parent=92 // pred_check_branch
          %687 = sbr.rel (%p685) target = $region97
        $region96: #{tpu_custom_call.1} parent=92 // pred_region
          %p688 = scmp.lt.s32.totalorder %s21, 1
          %s689 = scalar_select %p688, %s21, 1
          %s690 = smul.addr %s689, 8
          %s691 = smul.addr %s690, 4
          %s692 = scalar_lea.vmem %s4, %s691
        $region97: #{tpu_custom_call.1} parent=92 // pred_fallthru
          _
      $region93: #{tpu_custom_call.1} parent=5 // pred_fallthru
        _
    $region6: #{tpu_custom_call.1} parent=1 // loop_footer
      %s14 = sadd.s32 1, %s10
    $region7: #{tpu_custom_call.1} parent=1 // loop_footer_branch
      %9 = sbr.rel target = $region3
    $region8: #{tpu_custom_call.1} parent=1 // loop_exit
      _

// kernel: tpu_custom_call.1
$region0: #{tpu_custom_call.1}
  #allocation0 [shape = 'u32[]', space=smem, size = 0x4, offset = 0x4, fixed_abs, tag = 'smem constant byte address 0x4 - core index']
  #allocation1 [shape = 'u32[144,128]{1,0:T(1,128)}', space=vmem, size = 0x12000, scoped, tag = 'internal scratch']
  #allocation2 [shape = 'f32[64,8]{1,0:T(8,128)}', space=vmem, size = 0x8000, scoped, tag = 'scratch operand']
  %s0 = inlined_call_operand.vmem [shape: bf16[2,256,8], index: 0, kind: input, shape index: {}]
  %s1 = inlined_call_operand.vmem [shape: bf16[64,256], index: 1, kind: input, shape index: {}]
  %s2 = inlined_call_operand.vmem [shape: bf16[8,8], index: 2, kind: input, shape index: {}]
  %s3 = inlined_call_operand.vmem [shape: f32[64,8], index: 3, kind: input, shape index: {}]
  %s4 = inlined_call_operand.vmem [shape: bf16[2,64,8], index: 4, kind: output, shape index: {}]
  %s5 = sld [smem:[#allocation0]]
  $region98: #{tpu_custom_call.1} parent=0
    _
  %s7 = ssub.s32 1, %s5
  %s8 = scalar_select 0, %s7, %s5
  $region1: #{tpu_custom_call.1} parent=0
    #allocation3 [shape = 'u8[32768]{0}', space=vmem, size = 0x8000, scoped, tag = 'input window, operand 1']
    loop: start=0, step=1, limit=6
    $region2: #{tpu_custom_call.1} parent=1 // loop_pre_header
      _
    $region3: #{tpu_custom_call.1} parent=1 // loop_header
      %s10 = sphi 0, %s14
      %p11 = scmp.ge.s32.totalorder %s10, 6
      %s17 = sphi 0, %s29
      %s18 = sphi 0, %s25
      %s19 = sphi 0, %s17
      %s20 = sphi 0, %s18
      %s21 = sphi 0, %s19
      %s22 = sphi 0, %s20
      %s34 = sphi 0, %s36
      %s37 = sphi 0, %s34
      %s38 = sphi 0, %s37
      %s54 = sphi 0, %s38
      %s60 = sphi 0, %s62
      %s63 = sphi 0, %s60
      %s64 = sphi 0, %s63
      %s80 = sphi 0, %s64
      %s84 = sphi 0, %s84
      %s86 = sphi 0, %s84
      %s87 = sphi 0, %s86
      %s101 = sphi 0, %s87
      %s105 = sphi 0, %s105
      %s107 = sphi 0, %s105
      %s108 = sphi 0, %s107
      %s122 = sphi 0, %s108
      %s128 = sphi 0, %s130
      %s131 = sphi 0, %s128
      %s132 = sphi 0, %s131
      %s148 = sphi 0, %s132
    $region4: #{tpu_custom_call.1} parent=1 // loop_header_branch
      %13 = sbr.rel (%p11) target = $region8
    $region5: #{tpu_custom_call.1} parent=1 // loop_body
      %s15 = ssub.s32 %s10, 1
      %s16 = ssub.s32 %s10, 2
      %s23 = sadd.s32 1, %s18
      %p24 = scmp.ge.s32.totalorder %s23, 2
      %s25 = scalar_select %p24, 0, %s23
      %s26 = sadd.s32 1, %s17
      %s27 = scalar_select %p24, %s26, %s17
      %p28 = scmp.ge.s32.totalorder %s27, 2
      %s29 = scalar_select %p28, 0, %s27
      %s30 = ssub.s32 %s17, %s29
      %s31 = ssub.s32 %s18, %s25
      %s32 = sor.u32 %s30, %s31
      %p33 = scmp.eq.s32.totalorder %s32, 0
      %s35 = sadd.s32 %s34, 1
      %s36 = scalar_select %p33, %s34, %s35
      %p39 = pneg %p33
      %p40 = scmp.eq.s32.totalorder %s10, 3
      %p41 = por %p39, %p40
      %p42 = scmp.ne.s32.totalorder %s34, %s37
      %p43 = scmp.eq.s32.totalorder %s10, 0
      %p44 = por %p42, %p43
      %p45 = scmp.ne.s32.totalorder %s34, %s37
      %p46 = scmp.eq.s32.totalorder %s15, 3
      %p47 = por %p45, %p46
      %p48 = scmp.ne.s32.totalorder %s37, %s38
      %p49 = scmp.eq.s32.totalorder %s15, 0
      %p50 = por %p48, %p49
      %p51 = scmp.ne.s32.totalorder %s37, %s38
      %p52 = scmp.eq.s32.totalorder %s16, 3
      %p53 = por %p51, %p52
      %p55 = scmp.ne.s32.totalorder %s38, %s54
      %p56 = scmp.eq.s32.totalorder %s16, 0
      %p57 = por %p55, %p56
      %s58 = ssub.s32 %s18, %s25
      %p59 = scmp.eq.s32.totalorder %s58, 0
      %s61 = sadd.s32 %s60, 1
      %s62 = scalar_select %p59, %s60, %s61
      %p65 = pneg %p59
      %p66 = scmp.eq.s32.totalorder %s10, 3
      %p67 = por %p65, %p66
      %p68 = scmp.ne.s32.totalorder %s60, %s63
      %p69 = scmp.eq.s32.totalorder %s10, 0
      %p70 = por %p68, %p69
      %p71 = scmp.ne.s32.totalorder %s60, %s63
      %p72 = scmp.eq.s32.totalorder %s15, 3
      %p73 = por %p71, %p72
      %p74 = scmp.ne.s32.totalorder %s63, %s64
      %p75 = scmp.eq.s32.totalorder %s15, 0
      %p76 = por %p74, %p75
      %p77 = scmp.ne.s32.totalorder %s63, %s64
      %p78 = scmp.eq.s32.totalorder %s16, 3
      %p79 = por %p77, %p78
      %p81 = scmp.ne.s32.totalorder %s64, %s80
      %p82 = scmp.eq.s32.totalorder %s16, 0
      %p83 = por %p81, %p82
      %s85 = sadd.s32 %s84, 1
      %p88 = scmp.eq.s32.totalorder %s10, 3
      %p89 = scmp.ne.s32.totalorder %s84, %s86
      %p90 = scmp.eq.s32.totalorder %s10, 0
      %p91 = por %p89, %p90
      %p92 = scmp.ne.s32.totalorder %s84, %s86
      %p93 = scmp.eq.s32.totalorder %s15, 3
      %p94 = por %p92, %p93
      %p95 = scmp.ne.s32.totalorder %s86, %s87
      %p96 = scmp.eq.s32.totalorder %s15, 0
      %p97 = por %p95, %p96
      %p98 = scmp.ne.s32.totalorder %s86, %s87
      %p99 = scmp.eq.s32.totalorder %s16, 3
      %p100 = por %p98, %p99
      %p102 = scmp.ne.s32.totalorder %s87, %s101
      %p103 = scmp.eq.s32.totalorder %s16, 0
      %p104 = por %p102, %p103
      %s106 = sadd.s32 %s105, 1
      %p109 = scmp.eq.s32.totalorder %s10, 3
      %p110 = scmp.ne.s32.totalorder %s105, %s107
      %p111 = scmp.eq.s32.totalorder %s10, 0
      %p112 = por %p110, %p111
      %p113 = scmp.ne.s32.totalorder %s105, %s107
      %p114 = scmp.eq.s32.totalorder %s15, 3
      %p115 = por %p113, %p114
      %p116 = scmp.ne.s32.totalorder %s107, %s108
      %p117 = scmp.eq.s32.totalorder %s15, 0
      %p118 = por %p116, %p117
      %p119 = scmp.ne.s32.totalorder %s107, %s108
      %p120 = scmp.eq.s32.totalorder %s16, 3
      %p121 = por %p119, %p120
      %p123 = scmp.ne.s32.totalorder %s108, %s122
      %p124 = scmp.eq.s32.totalorder %s16, 0
      %p125 = por %p123, %p124
      %s126 = ssub.s32 %s17, %s29
      %p127 = scmp.eq.s32.totalorder %s126, 0
      %s129 = sadd.s32 %s128, 1
      %s130 = scalar_select %p127, %s128, %s129
      %p133 = pneg %p127
      %p134 = scmp.eq.s32.totalorder %s10, 3
      %p135 = por %p133, %p134
      %p136 = scmp.ne.s32.totalorder %s128, %s131
      %p137 = scmp.eq.s32.totalorder %s10, 0
      %p138 = por %p136, %p137
      %p139 = scmp.ne.s32.totalorder %s128, %s131
      %p140 = scmp.eq.s32.totalorder %s15, 3
      %p141 = por %p139, %p140
      %p142 = scmp.ne.s32.totalorder %s131, %s132
      %p143 = scmp.eq.s32.totalorder %s15, 0
      %p144 = por %p142, %p143
      %p145 = scmp.ne.s32.totalorder %s131, %s132
      %p146 = scmp.eq.s32.totalorder %s16, 3
      %p147 = por %p145, %p146
      %p149 = scmp.ne.s32.totalorder %s132, %s148
      %p150 = scmp.eq.s32.totalorder %s16, 0
      %p151 = por %p149, %p150
      %p152 = scmp.le.s32.totalorder 1, %s10
      %p153 = scmp.lt.s32.totalorder %s10, 5
      %p154 = pnand %p152, %p153
      %p155 = pneg %p154
      // Predicated region
      $region9: #{tpu_custom_call.1} parent=5 // pred_check
        _
      $region10: #{tpu_custom_call.1} parent=5 // pred_check_branch
        %157 = sbr.rel (%p154) target = $region12
      $region11: #{tpu_custom_call.1} parent=5 // pred_region
        %s158 = ssub.s32 %s10, 1
        // Predicated region
        $region13: #{tpu_custom_call.1} parent=11 // pred_check
          %p159 = pneg %p97
        $region14: #{tpu_custom_call.1} parent=11 // pred_check_branch
          %161 = sbr.rel (%p159) target = $region16
        $region15: #{tpu_custom_call.1} parent=11 // pred_region
          _
        $region16: #{tpu_custom_call.1} parent=11 // pred_fallthru
          _
        // Predicated region
        $region17: #{tpu_custom_call.1} parent=11 // pred_check
          %p162 = pneg %p118
        $region18: #{tpu_custom_call.1} parent=11 // pred_check_branch
          %164 = sbr.rel (%p162) target = $region20
        $region19: #{tpu_custom_call.1} parent=11 // pred_region
          _
        $region20: #{tpu_custom_call.1} parent=11 // pred_fallthru
          _
      $region12: #{tpu_custom_call.1} parent=5 // pred_fallthru
        _
      %p165 = scmp.lt.s32.totalorder %s10, 4
      // Predicated region
      $region21: #{tpu_custom_call.1} parent=5 // pred_check
        %p166 = pneg %p165
      $region22: #{tpu_custom_call.1} parent=5 // pred_check_branch
        %168 = sbr.rel (%p166) target = $region24
      $region23: #{tpu_custom_call.1} parent=5 // pred_region
        // Predicated region
        $region25: #{tpu_custom_call.1} parent=23 // pred_check
          %p169 = pneg %p44
        $region26: #{tpu_custom_call.1} parent=23 // pred_check_branch
          %171 = sbr.rel (%p169) target = $region28
        $region27: #{tpu_custom_call.1} parent=23 // pred_region
          %s172 = smul.u32 16, %s18
          %p173 = scmp.lt.s32.totalorder %s17, 1
          %s174 = scalar_select %p173, %s17, 1
          %p175 = scmp.lt.s32.totalorder %s172, 31
          %s176 = scalar_select %p175, %s172, 31
          %s177 = smul.addr %s174, 32
          %s178 = sadd.s32 %s176, %s177
          %s179 = smul.addr %s178, 4
          %s180 = scalar_lea.vmem %s0, %s179
          %s181 = smul.u32 16, %s18
        $region28: #{tpu_custom_call.1} parent=23 // pred_fallthru
          _
        // Predicated region
        $region29: #{tpu_custom_call.1} parent=23 // pred_check
          %p182 = pneg %p70
        $region30: #{tpu_custom_call.1} parent=23 // pred_check_branch
          %184 = sbr.rel (%p182) target = $region32
        $region31: #{tpu_custom_call.1} parent=23 // pred_region
          %s185 = sand.u32 %s60, 1
          %s186 = sand.u32 %s60, 1
          %s187 = smul.addr %s186, 32
          %s188 = scalar_lea.vmem [#allocation3], %s187
          %s189 = smul.addr %s18, 4
          %s190 = scalar_lea.vmem %s1, %s189
          // Predicated region
          $region33: #{tpu_custom_call.1} parent=31 // pred_check
            _
          $region34: #{tpu_custom_call.1} parent=31 // pred_check_branch
            %192 = sbr.rel (0) target = $region36
          $region35: #{tpu_custom_call.1} parent=31 // pred_region
            // Predicated region
            $region37: #{tpu_custom_call.1} parent=35 // pred_check
              _
            $region38: #{tpu_custom_call.1} parent=35 // pred_check_branch
              %194 = sbr.rel target = $region40
            $region39: #{tpu_custom_call.1} parent=35 // pred_region
              // Predicated region
              $region52: #{tpu_custom_call.1} parent=39 // pred_check
                _
              $region53: #{tpu_custom_call.1} parent=39 // pred_check_branch
                %224 = sbr.rel (0) target = $region55
              $region54: #{tpu_custom_call.1} parent=39 // pred_region
                loop: start=0, step=1, limit=1
                $region56: #{tpu_custom_call.1} parent=54 // loop_pre_header
                  _
                $region57: #{tpu_custom_call.1} parent=54 // loop_header
                  %s226 = sphi 0, %s230
                  %p227 = scmp.ge.s32.totalorder %s226, 1
                  %s231 = sphi %s190, %s190
                  %s232 = sphi %s188, %s188
                $region58: #{tpu_custom_call.1} parent=54 // loop_header_branch
                  %229 = sbr.rel (%p227) target = $region62
                $region59: #{tpu_custom_call.1} parent=54 // loop_body
                  _
                $region60: #{tpu_custom_call.1} parent=54 // loop_footer
                  %s230 = sadd.s32 1, %s226
                $region61: #{tpu_custom_call.1} parent=54 // loop_footer_branch
                  %225 = sbr.rel target = $region57
                $region62: #{tpu_custom_call.1} parent=54 // loop_exit
                  _
                %s234 = ssub.s32 16, 1
                loop: start=0, step=1, limit=1
                $region63: #{tpu_custom_call.1} parent=54 // loop_pre_header
                  _
                $region64: #{tpu_custom_call.1} parent=54 // loop_header
                  %s236 = sphi 0, %s240
                  %p237 = scmp.ge.s32.totalorder %s236, 1
                  %s241 = sphi %s190, %s190
                  %s242 = sphi %s188, %s188
                $region65: #{tpu_custom_call.1} parent=54 // loop_header_branch
                  %239 = sbr.rel (%p237) target = $region69
                $region66: #{tpu_custom_call.1} parent=54 // loop_body
                  %v243 = vld [vmem:[%s241] sm:%s234]
                  %244 = vst [vmem:[%s242] sm:%s234] %v243
                  %v245 = vld [vmem:[%s241 + $0x8] sm:%s234]
                  %246 = vst [vmem:[%s242 + $0x4] sm:%s234] %v245
                  %v247 = vld [vmem:[%s241 + $0x10] sm:%s234]
                  %248 = vst [vmem:[%s242 + $0x8] sm:%s234] %v247
                  %v249 = vld [vmem:[%s241 + $0x18] sm:%s234]
                  %250 = vst [vmem:[%s242 + $0xc] sm:%s234] %v249
                  %v251 = vld [vmem:[%s241 + $0x20] sm:%s234]
                  %252 = vst [vmem:[%s242 + $0x10] sm:%s234] %v251
                  %v253 = vld [vmem:[%s241 + $0x28] sm:%s234]
                  %254 = vst [vmem:[%s242 + $0x14] sm:%s234] %v253
                  %v255 = vld [vmem:[%s241 + $0x30] sm:%s234]
                  %256 = vst [vmem:[%s242 + $0x18] sm:%s234] %v255
                  %v257 = vld [vmem:[%s241 + $0x38] sm:%s234]
                  %258 = vst [vmem:[%s242 + $0x1c] sm:%s234] %v257
                $region67: #{tpu_custom_call.1} parent=54 // loop_footer
                  %s240 = sadd.s32 1, %s236
                $region68: #{tpu_custom_call.1} parent=54 // loop_footer_branch
                  %235 = sbr.rel target = $region64
                $region69: #{tpu_custom_call.1} parent=54 // loop_exit
                  _
              $region55: #{tpu_custom_call.1} parent=39 // pred_fallthru
                _
            $region40: #{tpu_custom_call.1} parent=35 // pred_fallthru
              _
            // Predicated region
            $region41: #{tpu_custom_call.1} parent=35 // pred_check
              _
            $region42: #{tpu_custom_call.1} parent=35 // pred_check_branch
              %196 = sbr.rel (0) target = $region44
            $region43: #{tpu_custom_call.1} parent=35 // pred_region
              %s198 = ssub.s32 16, 1
              loop: start=0, step=1, limit=1
              $region45: #{tpu_custom_call.1} parent=43 // loop_pre_header
                _
              $region46: #{tpu_custom_call.1} parent=43 // loop_header
                %s200 = sphi 0, %s204
                %p201 = scmp.ge.s32.totalorder %s200, 1
                %s205 = sphi %s190, %s190
                %s206 = sphi %s188, %s188
              $region47: #{tpu_custom_call.1} parent=43 // loop_header_branch
                %203 = sbr.rel (%p201) target = $region51
              $region48: #{tpu_custom_call.1} parent=43 // loop_body
                %v207 = vld [vmem:[%s205] sm:%s198]
                %208 = vst [vmem:[%s206] sm:%s198] %v207
                %v209 = vld [vmem:[%s205 + $0x8] sm:%s198]
                %210 = vst [vmem:[%s206 + $0x4] sm:%s198] %v209
                %v211 = vld [vmem:[%s205 + $0x10] sm:%s198]
                %212 = vst [vmem:[%s206 + $0x8] sm:%s198] %v211
                %v213 = vld [vmem:[%s205 + $0x18] sm:%s198]
                %214 = vst [vmem:[%s206 + $0xc] sm:%s198] %v213
                %v215 = vld [vmem:[%s205 + $0x20] sm:%s198]
                %216 = vst [vmem:[%s206 + $0x10] sm:%s198] %v215
                %v217 = vld [vmem:[%s205 + $0x28] sm:%s198]
                %218 = vst [vmem:[%s206 + $0x14] sm:%s198] %v217
                %v219 = vld [vmem:[%s205 + $0x30] sm:%s198]
                %220 = vst [vmem:[%s206 + $0x18] sm:%s198] %v219
                %v221 = vld [vmem:[%s205 + $0x38] sm:%s198]
                %222 = vst [vmem:[%s206 + $0x1c] sm:%s198] %v221
              $region49: #{tpu_custom_call.1} parent=43 // loop_footer
                %s204 = sadd.s32 1, %s200
              $region50: #{tpu_custom_call.1} parent=43 // loop_footer_branch
                %199 = sbr.rel target = $region46
              $region51: #{tpu_custom_call.1} parent=43 // loop_exit
                _
            $region44: #{tpu_custom_call.1} parent=35 // pred_fallthru
              _
          $region36: #{tpu_custom_call.1} parent=31 // pred_fallthru
            _
          %259 = vnop
        $region32: #{tpu_custom_call.1} parent=23 // pred_fallthru
          _
      $region24: #{tpu_custom_call.1} parent=5 // pred_fallthru
        _
      %p260 = scmp.le.s32.totalorder 1, %s10
      %p261 = scmp.lt.s32.totalorder %s10, 5
      %p262 = pnand %p260, %p261
      %p263 = pneg %p262
      // Predicated region
      $region70: #{tpu_custom_call.1} parent=5 // pred_check
        _
      $region71: #{tpu_custom_call.1} parent=5 // pred_check_branch
        %265 = sbr.rel (%p262) target = $region73
      $region72: #{tpu_custom_call.1} parent=5 // pred_region
        %s266 = ssub.s32 %s10, 1
        %s267 = sand.u32 %s63, 1
        %s268 = sand.u32 %s63, 1
        %s269 = smul.addr %s268, 32
        %s270 = scalar_lea.vmem [#allocation3], %s269
        // Predicated region
        $region74: #{tpu_custom_call.1} parent=72 // pred_check
          %p271 = pneg %p76
        $region75: #{tpu_custom_call.1} parent=72 // pred_check_branch
          %273 = sbr.rel (%p271) target = $region77
        $region76: #{tpu_custom_call.1} parent=72 // pred_region
          _
        $region77: #{tpu_custom_call.1} parent=72 // pred_fallthru
          _
        %s274 = smul.u32 16, %s20
        %p275 = scmp.lt.s32.totalorder %s19, 1
        %s276 = scalar_select %p275, %s19, 1
        %p277 = scmp.lt.s32.totalorder %s274, 31
        %s278 = scalar_select %p277, %s274, 31
        %s279 = smul.addr %s276, 32
        %s280 = sadd.s32 %s278, %s279
        %s281 = smul.addr %s280, 4
        %s282 = scalar_lea.vmem %s0, %s281
        %p283 = pneg %p50
        %p284 = pneg %p47
        %s285 = sand.u32 %s63, 1
        %s286 = sand.u32 %s63, 1
        %s287 = smul.addr %s286, 32
        %s288 = scalar_lea.vmem [#allocation3], %s287
        %p289 = pneg %p76
        %p290 = pneg %p73
        %p291 = pneg %p97
        %p292 = pneg %p94
        %p293 = pneg %p118
        %p294 = pneg %p115
        %p295 = pneg %p144
        %p296 = pneg %p141
        %p297 = scmp.lt.s32.totalorder %s19, 1
        %s298 = scalar_select %p297, %s19, 1
        %s299 = smul.addr %s298, 8
        %s300 = smul.addr %s299, 4
        %s301 = scalar_lea.vmem %s4, %s300
        %s302 = smul.u32 16, %s20
        %p303 = scmp.lt.s32.totalorder %s19, 1
        %s304 = scalar_select %p303, %s19, 1
        %p305 = scmp.lt.s32.totalorder %s302, 31
        %s306 = scalar_select %p305, %s302, 31
        %s307 = smul.addr %s304, 32
        %s308 = sadd.s32 %s306, %s307
        %s309 = smul.addr %s308, 4
        %s310 = scalar_lea.vmem %s0, %s309
        %s311 = smul.u32 16, %s20
        %p312 = scmp.lt.s32.totalorder %s19, 1
        %s313 = scalar_select %p312, %s19, 1
        %s314 = smul.addr %s313, 8
        %s315 = smul.addr %s314, 4
        %s316 = scalar_lea.vmem %s4, %s315
        %p318 = scmp.eq.s32.totalorder %s20, 0
        // Predicated region
        $region78: #{tpu_custom_call.1} parent=72 // pred_check
          %p319 = pneg %p318
        $region79: #{tpu_custom_call.1} parent=72 // pred_check_branch
          %321 = sbr.rel (%p319) target = $region81
        $region80: #{tpu_custom_call.1} parent=72 // pred_region
          %vm322 = vcmask 64512
          %323 = vst.msk [vmem:[#allocation2] sm:$0xff] %vm322, 0.0
          %324 = vst.msk [vmem:[#allocation2 + $0x8] sm:$0xff] %vm322, 0.0
          %325 = vst.msk [vmem:[#allocation2 + $0x10] sm:$0xff] %vm322, 0.0
          %326 = vst.msk [vmem:[#allocation2 + $0x18] sm:$0xff] %vm322, 0.0
          %327 = vst.msk [vmem:[#allocation2 + $0x20] sm:$0xff] %vm322, 0.0
          %328 = vst.msk [vmem:[#allocation2 + $0x28] sm:$0xff] %vm322, 0.0
          %329 = vst.msk [vmem:[#allocation2 + $0x30] sm:$0xff] %vm322, 0.0
          %330 = vst.msk [vmem:[#allocation2 + $0x38] sm:$0xff] %vm322, 0.0
        $region81: #{tpu_custom_call.1} parent=72 // pred_fallthru
          _
        %v331 = vld [vmem:[#allocation2] sm:$0xff]
        %v332 = vld [vmem:[#allocation2 + $0x8] sm:$0xff]
        %v333 = vld [vmem:[#allocation2 + $0x10] sm:$0xff]
        %v334 = vld [vmem:[#allocation2 + $0x18] sm:$0xff]
        %v335 = vld [vmem:[#allocation2 + $0x20] sm:$0xff]
        %v336 = vld [vmem:[#allocation2 + $0x28] sm:$0xff]
        %v337 = vld [vmem:[#allocation2 + $0x30] sm:$0xff]
        %v338 = vld [vmem:[#allocation2 + $0x38] sm:$0xff]
        %v339 = vld [vmem:[%s270] sm:$0xf]
        %v340 = vld [vmem:[%s270 + $0x4] sm:$0xf]
        %v341 = vld [vmem:[%s270 + $0x8] sm:$0xf]
        %v342 = vld [vmem:[%s270 + $0xc] sm:$0xf]
        %v343 = vld [vmem:[%s270 + $0x10] sm:$0xf]
        %v344 = vld [vmem:[%s270 + $0x14] sm:$0xf]
        %v345 = vld [vmem:[%s270 + $0x18] sm:$0xf]
        %v346 = vld [vmem:[%s270 + $0x1c] sm:$0xf]
        %v347 = vld [vmem:[%s310] sm:$0xf]
        %v348 = vld [vmem:[%s310 + $0x4] sm:$0xf]
        %v349 = vld [vmem:[%s310 + $0x8] sm:$0xf]
        %v350 = vld [vmem:[%s310 + $0xc] sm:$0xf]
        %v351 = vld [vmem:[%s310 + $0x10] sm:$0xf]
        %v352 = vld [vmem:[%s310 + $0x14] sm:$0xf]
        %v353 = vld [vmem:[%s310 + $0x18] sm:$0xf]
        %v354 = vld [vmem:[%s310 + $0x1c] sm:$0xf]
        %v355 = vld [vmem:[%s310 + $0x20] sm:$0xf]
        %v356 = vld [vmem:[%s310 + $0x24] sm:$0xf]
        %v357 = vld [vmem:[%s310 + $0x28] sm:$0xf]
        %v358 = vld [vmem:[%s310 + $0x2c] sm:$0xf]
        %v359 = vld [vmem:[%s310 + $0x30] sm:$0xf]
        %v360 = vld [vmem:[%s310 + $0x34] sm:$0xf]
        %v361 = vld [vmem:[%s310 + $0x38] sm:$0xf]
        %v362 = vld [vmem:[%s310 + $0x3c] sm:$0xf]
        %v371 = vunpack.c.l.b16 %v339
        %v372 = vunpack.c.l.b16 %v340
        %v373 = vunpack.c.l.b16 %v341
        %v374 = vunpack.c.l.b16 %v342
        %v375 = vunpack.c.l.b16 %v343
        %v376 = vunpack.c.l.b16 %v344
        %v377 = vunpack.c.l.b16 %v345
        %v378 = vunpack.c.l.b16 %v346
        %v379 = vpack.c.b16 %v372, %v371
        %v380 = vpack.c.b16 %v374, %v373
        %v381 = vpack.c.b16 %v376, %v375
        %v382 = vpack.c.b16 %v378, %v377
        %v403 = vunpack.c.l.b16 %v347
        %v404 = vunpack.c.l.b16 %v348
        %v405 = vunpack.c.l.b16 %v349
        %v406 = vunpack.c.l.b16 %v350
        %v407 = vunpack.c.l.b16 %v351
        %v408 = vunpack.c.l.b16 %v352
        %v409 = vunpack.c.l.b16 %v353
        %v410 = vunpack.c.l.b16 %v354
        %v411 = vunpack.c.l.b16 %v355
        %v412 = vunpack.c.l.b16 %v356
        %v413 = vunpack.c.l.b16 %v357
        %v414 = vunpack.c.l.b16 %v358
        %v415 = vunpack.c.l.b16 %v359
        %v416 = vunpack.c.l.b16 %v360
        %v417 = vunpack.c.l.b16 %v361
        %v418 = vunpack.c.l.b16 %v362
        %v419 = vpack.c.b16 %v404, %v403
        %v420 = vpack.c.b16 %v406, %v405
        %v421 = vpack.c.b16 %v408, %v407
        %v422 = vpack.c.b16 %v410, %v409
        %v423 = vpack.c.b16 %v412, %v411
        %v424 = vpack.c.b16 %v414, %v413
        %v425 = vpack.c.b16 %v416, %v415
        %v426 = vpack.c.b16 %v418, %v417
        %435 = vmatprep.subr.bf16.mxu0 0
        %436 = vmatpush1.bf16.msra.mxu0 %v426
        %437 = vmatprep.subr.bf16.mxu0 0
        %438 = vmatpush1.bf16.msra.mxu0 %v425
        %439 = vmatprep.subr.bf16.mxu0 0
        %440 = vmatpush1.bf16.msra.mxu0 %v424
        %441 = vmatprep.subr.bf16.mxu0 0
        %442 = vmatpush1.bf16.msra.mxu0 %v423
        %443 = vmatprep.subr.bf16.mxu0 0
        %444 = vmatpush1.bf16.msra.mxu0 %v422
        %445 = vmatprep.subr.bf16.mxu0 0
        %446 = vmatpush1.bf16.msra.mxu0 %v421
        %447 = vmatprep.subr.bf16.mxu0 0
        %448 = vmatpush1.bf16.msra.mxu0 %v420
        %449 = vmatprep.subr.bf16.mxu0 0
        %450 = vmatpush1.bf16.msra.mxu0 %v419
        %451 = vmatprep.subr.bf16.mxu0 0
        %452 = vmatpush2.bf16.msra.mxu0 0
        %453 = vmatprep.subr.bf16.mxu0 0
        %454 = vmatpush2.bf16.msra.mxu0 0
        %455 = vmatprep.subr.bf16.mxu0 0
        %456 = vmatpush2.bf16.msra.mxu0 0
        %457 = vmatprep.subr.bf16.mxu0 0
        %458 = vmatpush2.bf16.msra.mxu0 0
        %459 = vmatprep.subr.bf16.mxu0 0
        %460 = vmatpush2.bf16.msra.mxu0 0
        %461 = vmatprep.subr.bf16.mxu0 0
        %462 = vmatpush2.bf16.msra.mxu0 0
        %463 = vmatprep.subr.bf16.mxu0 0
        %464 = vmatpush2.bf16.msra.mxu0 0
        %465 = vmatprep.subr.bf16.mxu0 0
        %466 = vmatpush2.bf16.msra.mxu0 0
        %467 = vmatprep.mubr.bf16.mxu0 0
        %468 = vmatmul.mubr.bf16.gmra.mxu0 %v379
        %v469 = vpop.f32.mrf.mxu0
        %v470 = vadd.f32 0.0, %v469
        %v471 = vpop.f32.mrf.mxu0
        %v472 = vpop.f32.mrf.mxu0
        %v473 = vadd.f32 0.0, %v472
        %v474 = vpop.f32.mrf.mxu0
        %475 = vmatprep.mubr.bf16.mxu0 0
        %476 = vmatmul.mubr.bf16.gmra.mxu0 %v380
        %v477 = vpop.f32.mrf.mxu0
        %v478 = vadd.f32 0.0, %v477
        %v479 = vpop.f32.mrf.mxu0
        %v480 = vpop.f32.mrf.mxu0
        %v481 = vadd.f32 0.0, %v480
        %v482 = vpop.f32.mrf.mxu0
        %483 = vmatprep.mubr.bf16.mxu0 0
        %484 = vmatmul.mubr.bf16.gmra.mxu0 %v381
        %v485 = vpop.f32.mrf.mxu0
        %v486 = vadd.f32 0.0, %v485
        %v487 = vpop.f32.mrf.mxu0
        %v488 = vpop.f32.mrf.mxu0
        %v489 = vadd.f32 0.0, %v488
        %v490 = vpop.f32.mrf.mxu0
        %491 = vmatprep.mubr.bf16.mxu0 0
        %492 = vmatmul.mubr.bf16.gmra.mxu0 %v382
        %v493 = vpop.f32.mrf.mxu0
        %v494 = vadd.f32 0.0, %v493
        %v495 = vpop.f32.mrf.mxu0
        %v496 = vpop.f32.mrf.mxu0
        %v497 = vadd.f32 0.0, %v496
        %v498 = vpop.f32.mrf.mxu0
        %499 = vdwg.mxu0
        %v500 = vadd.f32 %v331, %v470
        %v501 = vadd.f32 %v332, %v473
        %v502 = vadd.f32 %v333, %v478
        %v503 = vadd.f32 %v334, %v481
        %v504 = vadd.f32 %v335, %v486
        %v505 = vadd.f32 %v336, %v489
        %v506 = vadd.f32 %v337, %v494
        %v507 = vadd.f32 %v338, %v497
        %vm508 = vcmask 64512
        %509 = vst.msk [vmem:[#allocation2] sm:$0xff] %vm508, %v500
        %510 = vst.msk [vmem:[#allocation2 + $0x8] sm:$0xff] %vm508, %v501
        %511 = vst.msk [vmem:[#allocation2 + $0x10] sm:$0xff] %vm508, %v502
        %512 = vst.msk [vmem:[#allocation2 + $0x18] sm:$0xff] %vm508, %v503
        %513 = vst.msk [vmem:[#allocation2 + $0x20] sm:$0xff] %vm508, %v504
        %514 = vst.msk [vmem:[#allocation2 + $0x28] sm:$0xff] %vm508, %v505
        %515 = vst.msk [vmem:[#allocation2 + $0x30] sm:$0xff] %vm508, %v506
        %516 = vst.msk [vmem:[#allocation2 + $0x38] sm:$0xff] %vm508, %v507
        %p517 = scmp.eq.s32.totalorder %s20, 1
        // Predicated region
        $region82: #{tpu_custom_call.1} parent=72 // pred_check
          %p518 = pneg %p517
        $region83: #{tpu_custom_call.1} parent=72 // pred_check_branch
          %520 = sbr.rel (%p518) target = $region85
        $region84: #{tpu_custom_call.1} parent=72 // pred_region
          %v521 = vld [vmem:[#allocation2] sm:$0xff]
          %v522 = vld [vmem:[#allocation2 + $0x8] sm:$0xff]
          %v523 = vld [vmem:[#allocation2 + $0x10] sm:$0xff]
          %v524 = vld [vmem:[#allocation2 + $0x18] sm:$0xff]
          %v525 = vld [vmem:[#allocation2 + $0x20] sm:$0xff]
          %v526 = vld [vmem:[#allocation2 + $0x28] sm:$0xff]
          %v527 = vld [vmem:[#allocation2 + $0x30] sm:$0xff]
          %v528 = vld [vmem:[#allocation2 + $0x38] sm:$0xff]
          %v529 = vpack.c.bf16 %v522, %v521
          %v530 = vpack.c.bf16 %v524, %v523
          %v531 = vpack.c.bf16 %v526, %v525
          %v532 = vpack.c.bf16 %v528, %v527
          %v533 = vld [vmem:[%s2] sm:$0xf]
          %v534 = vld [vmem:[%s3] sm:$0xff]
          %v535 = vld [vmem:[%s3 + $0x8] sm:$0xff]
          %v536 = vld [vmem:[%s3 + $0x10] sm:$0xff]
          %v537 = vld [vmem:[%s3 + $0x18] sm:$0xff]
          %v538 = vld [vmem:[%s3 + $0x20] sm:$0xff]
          %v539 = vld [vmem:[%s3 + $0x28] sm:$0xff]
          %v540 = vld [vmem:[%s3 + $0x30] sm:$0xff]
          %v541 = vld [vmem:[%s3 + $0x38] sm:$0xff]
          %v543 = vsel %vm508, %v529, 0
          %v546 = vsel %vm508, %v530, 0
          %v549 = vsel %vm508, %v531, 0
          %v552 = vsel %vm508, %v532, 0
          %vm554 = vcmask 1043456
          %v556 = vsel %vm554, %v533, 0
          %558 = vmatprep.subr.bf16.mxu0 0
          %559 = vmatpush1.bf16.msra.mxu0 0
          %560 = vmatprep.subr.bf16.mxu0 0
          %561 = vmatpush1.bf16.msra.mxu0 0
          %562 = vmatprep.subr.bf16.mxu0 0
          %563 = vmatpush1.bf16.msra.mxu0 0
          %564 = vmatprep.subr.bf16.mxu0 0
          %565 = vmatpush1.bf16.msra.mxu0 0
          %566 = vmatprep.subr.bf16.mxu0 0
          %567 = vmatpush1.bf16.msra.mxu0 0
          %568 = vmatprep.subr.bf16.mxu0 0
          %569 = vmatpush1.bf16.msra.mxu0 0
          %570 = vmatprep.subr.bf16.mxu0 0
          %571 = vmatpush1.bf16.msra.mxu0 0
          %572 = vmatprep.subr.bf16.mxu0 0
          %573 = vmatpush1.bf16.msra.mxu0 %v556
          %574 = vmatprep.subr.bf16.mxu0 0
          %575 = vmatpush2.bf16.msra.mxu0 0
          %576 = vmatprep.subr.bf16.mxu0 0
          %577 = vmatpush2.bf16.msra.mxu0 0
          %578 = vmatprep.subr.bf16.mxu0 0
          %579 = vmatpush2.bf16.msra.mxu0 0
          %580 = vmatprep.subr.bf16.mxu0 0
          %581 = vmatpush2.bf16.msra.mxu0 0
          %582 = vmatprep.subr.bf16.mxu0 0
          %583 = vmatpush2.bf16.msra.mxu0 0
          %584 = vmatprep.subr.bf16.mxu0 0
          %585 = vmatpush2.bf16.msra.mxu0 0
          %586 = vmatprep.subr.bf16.mxu0 0
          %587 = vmatpush2.bf16.msra.mxu0 0
          %588 = vmatprep.subr.bf16.mxu0 0
          %589 = vmatpush2.bf16.msra.mxu0 0
          %590 = vmatprep.mubr.bf16.mxu0 0
          %591 = vmatmul.mubr.bf16.gmra.mxu0 %v543
          %v592 = vpop.f32.mrf.mxu0
          %v593 = vadd.f32 %v534, %v592
          %v594 = vpop.f32.mrf.mxu0
          %v595 = vpop.f32.mrf.mxu0
          %v596 = vadd.f32 %v535, %v595
          %v597 = vpop.f32.mrf.mxu0
          %598 = vmatprep.mubr.bf16.mxu0 0
          %599 = vmatmul.mubr.bf16.gmra.mxu0 %v546
          %v600 = vpop.f32.mrf.mxu0
          %v601 = vadd.f32 %v536, %v600
          %v602 = vpop.f32.mrf.mxu0
          %v603 = vpop.f32.mrf.mxu0
          %v604 = vadd.f32 %v537, %v603
          %v605 = vpop.f32.mrf.mxu0
          %606 = vmatprep.mubr.bf16.mxu0 0
          %607 = vmatmul.mubr.bf16.gmra.mxu0 %v549
          %v608 = vpop.f32.mrf.mxu0
          %v609 = vadd.f32 %v538, %v608
          %v610 = vpop.f32.mrf.mxu0
          %v611 = vpop.f32.mrf.mxu0
          %v612 = vadd.f32 %v539, %v611
          %v613 = vpop.f32.mrf.mxu0
          %614 = vmatprep.mubr.bf16.mxu0 0
          %615 = vmatmul.mubr.bf16.gmra.mxu0 %v552
          %v616 = vpop.f32.mrf.mxu0
          %v617 = vadd.f32 %v540, %v616
          %v618 = vpop.f32.mrf.mxu0
          %v619 = vpop.f32.mrf.mxu0
          %v620 = vadd.f32 %v541, %v619
          %v621 = vpop.f32.mrf.mxu0
          %622 = vdwg.mxu0
          %v623 = vmax.f32 %v593, 0.0
          %v624 = vmax.f32 %v596, 0.0
          %v625 = vmax.f32 %v601, 0.0
          %v626 = vmax.f32 %v604, 0.0
          %v627 = vmax.f32 %v609, 0.0
          %v628 = vmax.f32 %v612, 0.0
          %v629 = vmax.f32 %v617, 0.0
          %v630 = vmax.f32 %v620, 0.0
          %v631 = vpack.c.bf16 %v624, %v623
          %v632 = vpack.c.bf16 %v626, %v625
          %v633 = vpack.c.bf16 %v628, %v627
          %v634 = vpack.c.bf16 %v630, %v629
          %v639 = vunpack.c.l.b16 %v631
          %v640 = vunpack.c.h.b16 %v631
          %v641 = vunpack.c.l.b16 %v632
          %v642 = vunpack.c.h.b16 %v632
          %v643 = vunpack.c.l.b16 %v633
          %v644 = vunpack.c.h.b16 %v633
          %v645 = vunpack.c.l.b16 %v634
          %v646 = vunpack.c.h.b16 %v634
          %v647 = vpack.c.b16 %v639, %v639
          %v648 = vpack.c.b16 %v640, %v640
          %v649 = vpack.c.b16 %v641, %v641
          %v650 = vpack.c.b16 %v642, %v642
          %v651 = vpack.c.b16 %v643, %v643
          %v652 = vpack.c.b16 %v644, %v644
          %v653 = vpack.c.b16 %v645, %v645
          %v654 = vpack.c.b16 %v646, %v646
          %vm663 = vcmask 60416
          %664 = vst.msk [vmem:[%s316] sm:$0xf] %vm663, %v647
          %665 = vst.msk [vmem:[%s316 + $0x4] sm:$0xf] %vm663, %v648
          %666 = vst.msk [vmem:[%s316 + $0x8] sm:$0xf] %vm663, %v649
          %667 = vst.msk [vmem:[%s316 + $0xc] sm:$0xf] %vm663, %v650
          %668 = vst.msk [vmem:[%s316 + $0x10] sm:$0xf] %vm663, %v651
          %669 = vst.msk [vmem:[%s316 + $0x14] sm:$0xf] %vm663, %v652
          %670 = vst.msk [vmem:[%s316 + $0x18] sm:$0xf] %vm663, %v653
          %671 = vst.msk [vmem:[%s316 + $0x1c] sm:$0xf] %vm663, %v654
        $region85: #{tpu_custom_call.1} parent=72 // pred_fallthru
          _
        %p672 = scmp.lt.s32.totalorder %s19, 1
        %s673 = scalar_select %p672, %s19, 1
        %s674 = smul.addr %s673, 8
        %s675 = smul.addr %s674, 4
        %s676 = scalar_lea.vmem %s4, %s675
        // Predicated region
        $region86: #{tpu_custom_call.1} parent=72 // pred_check
          %p677 = pneg %p141
        $region87: #{tpu_custom_call.1} parent=72 // pred_check_branch
          %679 = sbr.rel (%p677) target = $region89
        $region88: #{tpu_custom_call.1} parent=72 // pred_region
          _
        $region89: #{tpu_custom_call.1} parent=72 // pred_fallthru
          _
      $region73: #{tpu_custom_call.1} parent=5 // pred_fallthru
        _
      %p680 = scmp.le.s32.totalorder 2, %s10
      // Predicated region
      $region90: #{tpu_custom_call.1} parent=5 // pred_check
        %p681 = pneg %p680
      $region91: #{tpu_custom_call.1} parent=5 // pred_check_branch
        %683 = sbr.rel (%p681) target = $region93
      $region92: #{tpu_custom_call.1} parent=5 // pred_region
        %s684 = ssub.s32 %s10, 2
        // Predicated region
        $region94: #{tpu_custom_call.1} parent=92 // pred_check
          %p685 = pneg %p147
        $region95: #{tpu_custom_call.1} parent=92 // pred_check_branch
          %687 = sbr.rel (%p685) target = $region97
        $region96: #{tpu_custom_call.1} parent=92 // pred_region
          %p688 = scmp.lt.s32.totalorder %s21, 1
          %s689 = scalar_select %p688, %s21, 1
          %s690 = smul.addr %s689, 8
          %s691 = smul.addr %s690, 4
          %s692 = scalar_lea.vmem %s4, %s691
        $region97: #{tpu_custom_call.1} parent=92 // pred_fallthru
          _
      $region93: #{tpu_custom_call.1} parent=5 // pred_fallthru
        _
    $region6: #{tpu_custom_call.1} parent=1 // loop_footer
      %s14 = sadd.s32 1, %s10
    $region7: #{tpu_custom_call.1} parent=1 // loop_footer_branch
      %9 = sbr.rel target = $region3
    $region8: #{tpu_custom_call.1} parent=1 // loop_exit
      _

</llo_original>
